<compile_context>
chip_gen: v7x
topology: tpu7x:2x2x1
jax: 0.10.0
libtpu: 0.0.40
codegen_flags: <defaults>
</compile_context>

<pallas_src>
import functools

import jax
import jax.numpy as jnp
from jax.experimental import pallas as pl
from jax.experimental.pallas import tpu as pltpu


def _pick_mxu_mode():
    """int8 MXU where available (v4/v5/v6); exact bf16 path otherwise (v7x)."""
    try:
        kind = jax.devices()[0].device_kind.lower()
    except Exception:
        return "bf16"
    if "v7" in kind:
        return "bf16"
    if any(tag in kind for tag in ("v4", "v5", "v6")):
        return "int8"
    return "bf16"


def _round_up(n, m):
    return ((n + m - 1) // m) * m


def _pick_block_inter(inter, target):
    """Largest divisor of `inter` that is a multiple of 128 and <= target."""
    cands = [d for d in range(128, inter + 1, 128)
             if inter % d == 0 and d <= target]
    return max(cands) if cands else inter   # bi == inter (full extent) always legal


def _pack_int4_pairs(w, axis):
    """Pack int4-valued int8 weights two-per-byte along `axis`.

    The axis is split into halves: low nibble = first half, high nibble =
    second half, so the kernel-side unpack needs no interleave.
    """
    lo, hi = jnp.split(w, 2, axis=axis)
    packed = ((hi.astype(jnp.int32) & 0xF) << 4) | (lo.astype(jnp.int32) & 0xF)
    return jax.lax.bitcast_convert_type(packed.astype(jnp.uint8), jnp.int8)


def pack_a8w4_weights(params):
    """One-time (load-time) repack of the MLP weights into int4 pairs."""
    return dict(
        gate_wp=_pack_int4_pairs(params["gate_w"], axis=0),   # (H/2, I)
        up_wp=_pack_int4_pairs(params["up_w"], axis=0),       # (H/2, I)
        down_wp=_pack_int4_pairs(params["down_w"], axis=1),   # (I, H/2)
        gate_b=params["gate_b"], up_b=params["up_b"], down_b=params["down_b"],
        gate_alpha=params["gate_alpha"], up_alpha=params["up_alpha"],
        down_alpha=params["down_alpha"],
        down_input_scale=params["down_input_scale"],
        hidden_size=params["gate_w"].shape[0],
        intermediate_size=params["gate_w"].shape[1],
    )


def _unpack_i4(packed_i8, out_dtype):
    """Split packed int8 into (low-half, high-half) signed int4 values."""
    p = packed_i8.astype(jnp.int32)
    lo = ((p & 0xF) ^ 0x8) - 0x8          # sign-extend low nibble
    hi = p >> 4                            # arithmetic shift: signed high nibble
    return lo.astype(out_dtype), hi.astype(out_dtype)


def _a8w4_mlp_kernel(x_ref, gw_ref, gb_ref, uw_ref, ub_ref, dw_ref, db_ref,
                     o_ref, *scratch, gate_alpha, up_alpha, down_alpha,
                     inv_down_input_scale, mxu_mode, hidden_half):
    # x_ref: (bt, H) int8
    # gw_ref/uw_ref: (H/2, bi) int8 (two int4 per byte along H)
    # dw_ref: (bi, H/2) int8 (two int4 per byte along H)
    # gb_ref/ub_ref: (1, bi) f32 ; db_ref: (1, H) f32
    # o_ref: (bt, H) f32, resident across the I (reduction) axis.
    j = pl.program_id(1)
    nj = pl.num_programs(1)

    if mxu_mode == "int8":
        # Native integer MXU: int8 x int8 (int4-valued) -> int32, exact.
        op_dtype = jnp.int8

        def mm(a, b):
            return jnp.dot(a, b, preferred_element_type=jnp.int32).astype(
                jnp.float32)
    else:
        # v7x path: bf16 MXU with f32 accumulation.  int8/int4 values are
        # exactly representable in bf16 and each half-K partial sum stays
        # well below 2^24, so the result is exact.
        op_dtype = jnp.bfloat16

        def mm(a, b):
            return jnp.dot(a, b, preferred_element_type=jnp.float32)

    if mxu_mode == "bf16":
        # Hoist the int8->bf16 activation cast out of the reduction loop.
        xb_ref = scratch[0]

        @pl.when(j == 0)
        def _():
            xb_ref[...] = x_ref[...].astype(jnp.bfloat16)

        x = xb_ref[...]
    else:
        x = x_ref[...]

    x_lo = x[:, :hidden_half]
    x_hi = x[:, hidden_half:]

    # gate/up projections on this I-chunk: unpack int4 halves, two half-K
    # matmuls summed, dequant + fp32 bias.
    gw_lo, gw_hi = _unpack_i4(gw_ref[...], op_dtype)
    uw_lo, uw_hi = _unpack_i4(uw_ref[...], op_dtype)
    g = (mm(x_lo, gw_lo) + mm(x_hi, gw_hi)) * gate_alpha + gb_ref[...]
    u = (mm(x_lo, uw_lo) + mm(x_hi, uw_hi)) * up_alpha + ub_ref[...]

    # SiLU(gate) * up in fp32, then requantize to int8 range for down_proj.
    h = g * jax.nn.sigmoid(g) * u
    h_q = jnp.clip(jnp.round(h * inv_down_input_scale),
                   -128.0, 127.0).astype(op_dtype)

    # down_proj partial for this I-chunk: two half-N matmuls, concatenated
    # along lanes (H/2 is a multiple of 128 -> tile-aligned, cheap).
    dw_lo, dw_hi = _unpack_i4(dw_ref[...], op_dtype)
    partial = jnp.concatenate([mm(h_q, dw_lo), mm(h_q, dw_hi)], axis=-1)

    @pl.when(j == 0)
    def _():
        o_ref[...] = partial

    @pl.when(j > 0)
    def _():
        o_ref[...] += partial

    @pl.when(j == nj - 1)
    def _():
        o_ref[...] = o_ref[...] * down_alpha + db_ref[...]


def a8w4_llama_mlp(x_i8, packed, *, block_tokens=256, block_inter=None,
                   mxu_mode=None):
    """x_i8: (B, S, H) int8 activations; `packed` from pack_a8w4_weights.

    Returns (B, S, H) float32.
    """
    B, S, H = x_i8.shape
    I = packed["intermediate_size"]
    assert packed["hidden_size"] == H
    assert H % 256 == 0, "hidden_size must be a multiple of 256 (int4 halves)"

    if mxu_mode is None:
        mxu_mode = _pick_mxu_mode()

    T = B * S
    bt = max(32, min(block_tokens, _round_up(T, 32)))
    bt = _round_up(bt, 32)

    if block_inter is None:
        # Fewer reduction steps where VMEM allows (128 MiB v5e/v6e); smaller
        # steps on the bf16 path to respect the 64 MiB v7x budget.
        block_inter = 1024 if mxu_mode == "int8" else 512
    bi = _pick_block_inter(I, block_inter)
    assert I % bi == 0

    x2d = x_i8.reshape(T, H)
    T_pad = pl.cdiv(T, bt) * bt
    if T_pad != T:
        x2d = jnp.pad(x2d, ((0, T_pad - T), (0, 0)))

    inv_scale = float(1.0 / float(packed["down_input_scale"]))

    kernel = functools.partial(
        _a8w4_mlp_kernel,
        gate_alpha=float(packed["gate_alpha"]),
        up_alpha=float(packed["up_alpha"]),
        down_alpha=float(packed["down_alpha"]),
        inv_down_input_scale=inv_scale,
        mxu_mode=mxu_mode,
        hidden_half=H // 2,
    )

    scratch = []
    if mxu_mode == "bf16":
        scratch.append(pltpu.VMEM((bt, H), jnp.bfloat16))   # hoisted x cast

    n_token_tiles = T_pad // bt
    cost = pl.CostEstimate(
        flops=2 * T_pad * H * I * 3,                      # three matmuls
        transcendentals=T_pad * I,                        # sigmoid
        bytes_accessed=(n_token_tiles * (3 * H * I // 2)  # packed weights, re-streamed per token tile
                        + T_pad * H                       # int8 activations
                        + 4 * T_pad * H                   # fp32 output
                        + n_token_tiles * 4 * (2 * I + H)),  # fp32 biases per token tile
    )

    vmem_limit = (96 if mxu_mode == "int8" else 56) * 1024 * 1024

    out2d = pl.pallas_call(
        kernel,
        out_shape=jax.ShapeDtypeStruct((T_pad, H), jnp.float32),
        grid_spec=pltpu.PrefetchScalarGridSpec(
            num_scalar_prefetch=0,
            grid=(n_token_tiles, I // bi),                  # reduction axis last
            in_specs=[
                pl.BlockSpec((bt, H), lambda i, j: (i, 0)),        # x (int8)
                pl.BlockSpec((H // 2, bi), lambda i, j: (0, j)),   # gate_wp
                pl.BlockSpec((1, bi), lambda i, j: (0, j)),        # gate_b
                pl.BlockSpec((H // 2, bi), lambda i, j: (0, j)),   # up_wp
                pl.BlockSpec((1, bi), lambda i, j: (0, j)),        # up_b
                pl.BlockSpec((bi, H // 2), lambda i, j: (j, 0)),   # down_wp
                pl.BlockSpec((1, H), lambda i, j: (0, 0)),         # down_b
            ],
            out_specs=pl.BlockSpec((bt, H), lambda i, j: (i, 0)),
            scratch_shapes=scratch,
        ),
        compiler_params=pltpu.CompilerParams(
            dimension_semantics=("parallel", "arbitrary"),
            vmem_limit_bytes=vmem_limit,
        ),
        cost_estimate=cost,
    )(x2d, packed["gate_wp"], packed["gate_b"], packed["up_wp"],
      packed["up_b"], packed["down_wp"], packed["down_b"])

    return out2d[:T].reshape(B, S, H)


def _reference(x_i8, p):
    """Pure-JAX reference of the same forward (unpacked weights)."""
    xf = x_i8.astype(jnp.float32)
    g = xf @ p["gate_w"].astype(jnp.float32) * p["gate_alpha"] + p["gate_b"][0]
    u = xf @ p["up_w"].astype(jnp.float32) * p["up_alpha"] + p["up_b"][0]
    h = g * jax.nn.sigmoid(g) * u
    inv = float(1.0 / float(p["down_input_scale"]))
    hq = jnp.clip(jnp.round(h * inv), -128.0, 127.0)
    return hq @ p["down_w"].astype(jnp.float32) * p["down_alpha"] + p["down_b"][0]


if __name__ == "__main__":
    B, S, H, I = 2, 8, 256, 512  # batch, seq, hidden_size, intermediate_size

    key = jax.random.PRNGKey(0)
    kx, kgw, kuw, kdw, kgb, kub, kdb = jax.random.split(key, 7)

    # int8 activations, int4-valued weights (values in [-8, 7]).
    x = jax.random.randint(kx, (B, S, H), -128, 128, dtype=jnp.int32).astype(jnp.int8)
    params = {
        "gate_w": jax.random.randint(kgw, (H, I), -8, 8, dtype=jnp.int32).astype(jnp.int8),
        "up_w":   jax.random.randint(kuw, (H, I), -8, 8, dtype=jnp.int32).astype(jnp.int8),
        "down_w": jax.random.randint(kdw, (I, H), -8, 8, dtype=jnp.int32).astype(jnp.int8),
        "gate_b": (0.02 * jax.random.normal(kgb, (1, I))).astype(jnp.float32),
        "up_b":   (0.02 * jax.random.normal(kub, (1, I))).astype(jnp.float32),
        "down_b": (0.02 * jax.random.normal(kdb, (1, H))).astype(jnp.float32),
        # dequant scales (alpha = input_scale * weight_scale) and the
        # requantization scale from the registered buffer.
        "gate_alpha": 1.0e-3,
        "up_alpha": 1.0e-3,
        "down_alpha": 2.0e-3,
        "down_input_scale": 0.1,
    }

    packed = jax.tree_util.tree_map(jax.block_until_ready,
                                    pack_a8w4_weights(params))

    # block_inter=256 -> 2 reduction steps over I, exercising the in-place
    # output accumulation and the int4 unpack on both halves.
    out = a8w4_llama_mlp(x, packed, block_tokens=128, block_inter=256)
    out = jax.block_until_ready(out)

    ref = _reference(x.reshape(B * S, H), params).reshape(B, S, H)
    assert out.shape == (B, S, H) and out.dtype == jnp.float32
    # Matmuls and requant are exact; tolerance only needs to absorb a possible
    # +/-1 LSB requant flip at a round-half boundary if the Pallas and XLA
    # sigmoid approximations differ in the last ulp (|1 LSB| = 7*down_alpha).
    assert jnp.allclose(out, ref, rtol=1e-4, atol=2e-2)
    assert float(jnp.median(jnp.abs(out - ref))) < 1e-4

    print("KERNEL_OK")
</pallas_src>

<mosaic_0001>
module attributes {stable_mosaic.version = 11 : i64} {
  func.func @_a8w4_mlp_kernel(%arg0: i32, %arg1: i32, %arg2: memref<32x256xi8, #tpu.memory_space<vmem>>, %arg3: memref<128x256xi8, #tpu.memory_space<vmem>>, %arg4: memref<1x256xf32, #tpu.memory_space<vmem>>, %arg5: memref<128x256xi8, #tpu.memory_space<vmem>>, %arg6: memref<1x256xf32, #tpu.memory_space<vmem>>, %arg7: memref<256x128xi8, #tpu.memory_space<vmem>>, %arg8: memref<1x256xf32, #tpu.memory_space<vmem>>, %arg9: memref<32x256xf32, #tpu.memory_space<vmem>>, %arg10: memref<32x256xbf16, #tpu.memory_space<vmem>>) attributes {dimension_semantics = [#tpu.dimension_semantics<parallel>, #tpu.dimension_semantics<arbitrary>], iteration_bounds = array<i64: 1, 2>, scalar_prefetch = 0 : i64, scratch_operands = 1 : i64, tpu.core_type = #tpu.core_type<tc>, window_params = [{transform_indices = @transform_0, window_bounds = array<i64: 32, 256>}, {transform_indices = @transform_1, window_bounds = array<i64: 128, 256>}, {transform_indices = @transform_2, window_bounds = array<i64: 1, 256>}, {transform_indices = @transform_3, window_bounds = array<i64: 128, 256>}, {transform_indices = @transform_4, window_bounds = array<i64: 1, 256>}, {transform_indices = @transform_5, window_bounds = array<i64: 256, 128>}, {pipeline_mode = #tpu.pipeline_mode<synchronous>, transform_indices = @transform_6, window_bounds = array<i64: 1, 256>}, {transform_indices = @transform_7, window_bounds = array<i64: 32, 256>}]} {
    %c0_i32 = arith.constant 0 : i32
    %0 = arith.cmpi eq, %arg1, %c0_i32 : i32
    %1 = arith.extui %0 : i1 to i32
    %c0_i32_0 = arith.constant 0 : i32
    %2 = arith.cmpi ne, %1, %c0_i32_0 : i32
    scf.if %2 {
      %c0_37 = arith.constant 0 : index
      %c0_38 = arith.constant 0 : index
      %85 = vector.load %arg2[%c0_37, %c0_38] : memref<32x256xi8, #tpu.memory_space<vmem>>, vector<32x256xi8>
      %86 = arith.sitofp %85 : vector<32x256xi8> to vector<32x256xbf16>
      %c0_39 = arith.constant 0 : index
      %c0_40 = arith.constant 0 : index
      %87 = vector.load %arg10[%c0_39, %c0_40] : memref<32x256xbf16, #tpu.memory_space<vmem>>, vector<32x256xbf16>
      tpu.vector_store %arg10[%c0_39, %c0_40], %86 {strides = array<i32>} : memref<32x256xbf16, #tpu.memory_space<vmem>>, vector<32x256xbf16>,
    } else {
    }
    %c0 = arith.constant 0 : index
    %c0_1 = arith.constant 0 : index
    %3 = vector.load %arg10[%c0, %c0_1] : memref<32x256xbf16, #tpu.memory_space<vmem>>, vector<32x256xbf16>
    %4 = vector.extract_strided_slice %3 {offsets = [0, 0], sizes = [32, 128], strides = [1, 1]} : vector<32x256xbf16> to vector<32x128xbf16>
    %5 = vector.extract_strided_slice %3 {offsets = [0, 128], sizes = [32, 128], strides = [1, 1]} : vector<32x256xbf16> to vector<32x128xbf16>
    %c0_2 = arith.constant 0 : index
    %c0_3 = arith.constant 0 : index
    %6 = vector.load %arg3[%c0_2, %c0_3] : memref<128x256xi8, #tpu.memory_space<vmem>>, vector<128x256xi8>
    %7 = arith.extsi %6 : vector<128x256xi8> to vector<128x256xi32>
    %c15_i32 = arith.constant 15 : i32
    %8 = vector.broadcast %c15_i32 : i32 to vector<128x256xi32>
    %9 = arith.andi %7, %8 : vector<128x256xi32>
    %c8_i32 = arith.constant 8 : i32
    %10 = vector.broadcast %c8_i32 : i32 to vector<128x256xi32>
    %11 = arith.xori %9, %10 : vector<128x256xi32>
    %c8_i32_4 = arith.constant 8 : i32
    %12 = vector.broadcast %c8_i32_4 : i32 to vector<128x256xi32>
    %13 = arith.subi %11, %12 : vector<128x256xi32>
    %c4_i32 = arith.constant 4 : i32
    %14 = vector.broadcast %c4_i32 : i32 to vector<128x256xi32>
    %15 = arith.shrsi %7, %14 : vector<128x256xi32>
    %16 = arith.sitofp %13 : vector<128x256xi32> to vector<128x256xbf16>
    %17 = arith.sitofp %15 : vector<128x256xi32> to vector<128x256xbf16>
    %c0_5 = arith.constant 0 : index
    %c0_6 = arith.constant 0 : index
    %18 = vector.load %arg5[%c0_5, %c0_6] : memref<128x256xi8, #tpu.memory_space<vmem>>, vector<128x256xi8>
    %19 = arith.extsi %18 : vector<128x256xi8> to vector<128x256xi32>
    %c15_i32_7 = arith.constant 15 : i32
    %20 = vector.broadcast %c15_i32_7 : i32 to vector<128x256xi32>
    %21 = arith.andi %19, %20 : vector<128x256xi32>
    %c8_i32_8 = arith.constant 8 : i32
    %22 = vector.broadcast %c8_i32_8 : i32 to vector<128x256xi32>
    %23 = arith.xori %21, %22 : vector<128x256xi32>
    %c8_i32_9 = arith.constant 8 : i32
    %24 = vector.broadcast %c8_i32_9 : i32 to vector<128x256xi32>
    %25 = arith.subi %23, %24 : vector<128x256xi32>
    %c4_i32_10 = arith.constant 4 : i32
    %26 = vector.broadcast %c4_i32_10 : i32 to vector<128x256xi32>
    %27 = arith.shrsi %19, %26 : vector<128x256xi32>
    %28 = arith.sitofp %25 : vector<128x256xi32> to vector<128x256xbf16>
    %29 = arith.sitofp %27 : vector<128x256xi32> to vector<128x256xbf16>
    %cst = arith.constant dense<0.000000e+00> : vector<32x256xf32>
    %30 = tpu.matmul %4, %16, %cst {dimension_numbers = #tpu.dot_dimension_numbers<[1], [0], [0], [1], [0, 0, 1, 1], [], []>} : vector<32x128xbf16>, vector<128x256xbf16>, vector<32x256xf32> -> vector<32x256xf32>
    %cst_11 = arith.constant dense<0.000000e+00> : vector<32x256xf32>
    %31 = tpu.matmul %5, %17, %cst_11 {dimension_numbers = #tpu.dot_dimension_numbers<[1], [0], [0], [1], [0, 0, 1, 1], [], []>} : vector<32x128xbf16>, vector<128x256xbf16>, vector<32x256xf32> -> vector<32x256xf32>
    %32 = arith.addf %30, %31 : vector<32x256xf32>
    %cst_12 = arith.constant 1.000000e-03 : f32
    %33 = vector.broadcast %cst_12 : f32 to vector<32x256xf32>
    %34 = arith.mulf %32, %33 : vector<32x256xf32>
    %c0_13 = arith.constant 0 : index
    %c0_14 = arith.constant 0 : index
    %35 = vector.load %arg4[%c0_13, %c0_14] : memref<1x256xf32, #tpu.memory_space<vmem>>, vector<1x256xf32>
    %36 = vector.broadcast %35 : vector<1x256xf32> to vector<32x256xf32>
    %37 = arith.addf %34, %36 : vector<32x256xf32>
    %cst_15 = arith.constant dense<0.000000e+00> : vector<32x256xf32>
    %38 = tpu.matmul %4, %28, %cst_15 {dimension_numbers = #tpu.dot_dimension_numbers<[1], [0], [0], [1], [0, 0, 1, 1], [], []>} : vector<32x128xbf16>, vector<128x256xbf16>, vector<32x256xf32> -> vector<32x256xf32>
    %cst_16 = arith.constant dense<0.000000e+00> : vector<32x256xf32>
    %39 = tpu.matmul %5, %29, %cst_16 {dimension_numbers = #tpu.dot_dimension_numbers<[1], [0], [0], [1], [0, 0, 1, 1], [], []>} : vector<32x128xbf16>, vector<128x256xbf16>, vector<32x256xf32> -> vector<32x256xf32>
    %40 = arith.addf %38, %39 : vector<32x256xf32>
    %cst_17 = arith.constant 1.000000e-03 : f32
    %41 = vector.broadcast %cst_17 : f32 to vector<32x256xf32>
    %42 = arith.mulf %40, %41 : vector<32x256xf32>
    %c0_18 = arith.constant 0 : index
    %c0_19 = arith.constant 0 : index
    %43 = vector.load %arg6[%c0_18, %c0_19] : memref<1x256xf32, #tpu.memory_space<vmem>>, vector<1x256xf32>
    %44 = vector.broadcast %43 : vector<1x256xf32> to vector<32x256xf32>
    %45 = arith.addf %42, %44 : vector<32x256xf32>
    %46 = arith.negf %37 : vector<32x256xf32>
    %47 = math.exp %46 : vector<32x256xf32>
    %cst_20 = arith.constant 1.000000e+00 : f32
    %48 = vector.broadcast %cst_20 : f32 to vector<32x256xf32>
    %49 = arith.addf %48, %47 : vector<32x256xf32>
    %50 = arith.divf %48, %49 : vector<32x256xf32>
    %51 = arith.mulf %37, %50 : vector<32x256xf32>
    %52 = arith.mulf %51, %45 : vector<32x256xf32>
    %cst_21 = arith.constant 1.000000e+01 : f32
    %53 = vector.broadcast %cst_21 : f32 to vector<32x256xf32>
    %54 = arith.mulf %52, %53 : vector<32x256xf32>
    %55 = math.roundeven %54 : vector<32x256xf32>
    %cst_22 = arith.constant -1.280000e+02 : f32
    %cst_23 = arith.constant 1.270000e+02 : f32
    %56 = vector.broadcast %cst_22 : f32 to vector<32x256xf32>
    %57 = arith.maximumf %56, %55 : vector<32x256xf32>
    %58 = vector.broadcast %cst_23 : f32 to vector<32x256xf32>
    %59 = arith.minimumf %58, %57 : vector<32x256xf32>
    %60 = arith.truncf %59 : vector<32x256xf32> to vector<32x256xbf16>
    %c0_24 = arith.constant 0 : index
    %c0_25 = arith.constant 0 : index
    %61 = vector.load %arg7[%c0_24, %c0_25] : memref<256x128xi8, #tpu.memory_space<vmem>>, vector<256x128xi8>
    %62 = arith.extsi %61 : vector<256x128xi8> to vector<256x128xi32>
    %c15_i32_26 = arith.constant 15 : i32
    %63 = vector.broadcast %c15_i32_26 : i32 to vector<256x128xi32>
    %64 = arith.andi %62, %63 : vector<256x128xi32>
    %c8_i32_27 = arith.constant 8 : i32
    %65 = vector.broadcast %c8_i32_27 : i32 to vector<256x128xi32>
    %66 = arith.xori %64, %65 : vector<256x128xi32>
    %c8_i32_28 = arith.constant 8 : i32
    %67 = vector.broadcast %c8_i32_28 : i32 to vector<256x128xi32>
    %68 = arith.subi %66, %67 : vector<256x128xi32>
    %c4_i32_29 = arith.constant 4 : i32
    %69 = vector.broadcast %c4_i32_29 : i32 to vector<256x128xi32>
    %70 = arith.shrsi %62, %69 : vector<256x128xi32>
    %71 = arith.sitofp %68 : vector<256x128xi32> to vector<256x128xbf16>
    %72 = arith.sitofp %70 : vector<256x128xi32> to vector<256x128xbf16>
    %cst_30 = arith.constant dense<0.000000e+00> : vector<32x128xf32>
    %73 = tpu.matmul %60, %71, %cst_30 {dimension_numbers = #tpu.dot_dimension_numbers<[1], [0], [0], [1], [0, 0, 1, 1], [], []>} : vector<32x256xbf16>, vector<256x128xbf16>, vector<32x128xf32> -> vector<32x128xf32>
    %cst_31 = arith.constant dense<0.000000e+00> : vector<32x128xf32>
    %74 = tpu.matmul %60, %72, %cst_31 {dimension_numbers = #tpu.dot_dimension_numbers<[1], [0], [0], [1], [0, 0, 1, 1], [], []>} : vector<32x256xbf16>, vector<256x128xbf16>, vector<32x128xf32> -> vector<32x128xf32>
    %75 = tpu.concatenate %73, %74 in 1 : vector<32x128xf32>, vector<32x128xf32> -> vector<32x256xf32>
    %c0_i32_32 = arith.constant 0 : i32
    %76 = arith.cmpi eq, %arg1, %c0_i32_32 : i32
    %77 = arith.extui %76 : i1 to i32
    %c0_i32_33 = arith.constant 0 : i32
    %78 = arith.cmpi ne, %77, %c0_i32_33 : i32
    scf.if %78 {
      %c0_37 = arith.constant 0 : index
      %c0_38 = arith.constant 0 : index
      %85 = vector.load %arg9[%c0_37, %c0_38] : memref<32x256xf32, #tpu.memory_space<vmem>>, vector<32x256xf32>
      tpu.vector_store %arg9[%c0_37, %c0_38], %75 {strides = array<i32>} : memref<32x256xf32, #tpu.memory_space<vmem>>, vector<32x256xf32>,
    } else {
    }
    %c0_i32_34 = arith.constant 0 : i32
    %79 = arith.cmpi sgt, %arg1, %c0_i32_34 : i32
    %80 = arith.extui %79 : i1 to i32
    %c0_i32_35 = arith.constant 0 : i32
    %81 = arith.cmpi ne, %80, %c0_i32_35 : i32
    scf.if %81 {
      %c0_37 = arith.constant 0 : index
      %c0_38 = arith.constant 0 : index
      %85 = vector.load %arg9[%c0_37, %c0_38] : memref<32x256xf32, #tpu.memory_space<vmem>>, vector<32x256xf32>
      %86 = arith.addf %85, %75 : vector<32x256xf32>
      %c0_39 = arith.constant 0 : index
      %c0_40 = arith.constant 0 : index
      %87 = vector.load %arg9[%c0_39, %c0_40] : memref<32x256xf32, #tpu.memory_space<vmem>>, vector<32x256xf32>
      tpu.vector_store %arg9[%c0_39, %c0_40], %86 {strides = array<i32>} : memref<32x256xf32, #tpu.memory_space<vmem>>, vector<32x256xf32>,
    } else {
    }
    %c1_i32 = arith.constant 1 : i32
    %82 = arith.cmpi eq, %arg1, %c1_i32 : i32
    %83 = arith.extui %82 : i1 to i32
    %c0_i32_36 = arith.constant 0 : i32
    %84 = arith.cmpi ne, %83, %c0_i32_36 : i32
    scf.if %84 {
      %c0_37 = arith.constant 0 : index
      %c0_38 = arith.constant 0 : index
      %85 = vector.load %arg9[%c0_37, %c0_38] : memref<32x256xf32, #tpu.memory_space<vmem>>, vector<32x256xf32>
      %cst_39 = arith.constant 2.000000e-03 : f32
      %86 = vector.broadcast %cst_39 : f32 to vector<32x256xf32>
      %87 = arith.mulf %85, %86 : vector<32x256xf32>
      %c0_40 = arith.constant 0 : index
      %c0_41 = arith.constant 0 : index
      %88 = vector.load %arg8[%c0_40, %c0_41] : memref<1x256xf32, #tpu.memory_space<vmem>>, vector<1x256xf32>
      %89 = vector.broadcast %88 : vector<1x256xf32> to vector<32x256xf32>
      %90 = arith.addf %87, %89 : vector<32x256xf32>
      %c0_42 = arith.constant 0 : index
      %c0_43 = arith.constant 0 : index
      %91 = vector.load %arg9[%c0_42, %c0_43] : memref<32x256xf32, #tpu.memory_space<vmem>>, vector<32x256xf32>
      tpu.vector_store %arg9[%c0_42, %c0_43], %90 {strides = array<i32>} : memref<32x256xf32, #tpu.memory_space<vmem>>, vector<32x256xf32>,
    } else {
    }
    return
  }
  func.func @transform_0(%arg0: i32, %arg1: i32) -> (i32, i32) {
    %c0_i32 = arith.constant 0 : i32
    %c0_i32_0 = arith.constant 0 : i32
    return %arg0, %c0_i32 : i32, i32
  }
  func.func @transform_1(%arg0: i32, %arg1: i32) -> (i32, i32) {
    %c0_i32 = arith.constant 0 : i32
    %c0_i32_0 = arith.constant 0 : i32
    return %c0_i32, %arg1 : i32, i32
  }
  func.func @transform_2(%arg0: i32, %arg1: i32) -> (i32, i32) {
    %c0_i32 = arith.constant 0 : i32
    %c0_i32_0 = arith.constant 0 : i32
    return %c0_i32, %arg1 : i32, i32
  }
  func.func @transform_3(%arg0: i32, %arg1: i32) -> (i32, i32) {
    %c0_i32 = arith.constant 0 : i32
    %c0_i32_0 = arith.constant 0 : i32
    return %c0_i32, %arg1 : i32, i32
  }
  func.func @transform_4(%arg0: i32, %arg1: i32) -> (i32, i32) {
    %c0_i32 = arith.constant 0 : i32
    %c0_i32_0 = arith.constant 0 : i32
    return %c0_i32, %arg1 : i32, i32
  }
  func.func @transform_5(%arg0: i32, %arg1: i32) -> (i32, i32) {
    %c0_i32 = arith.constant 0 : i32
    %c0_i32_0 = arith.constant 0 : i32
    return %arg1, %c0_i32 : i32, i32
  }
  func.func @transform_6(%arg0: i32, %arg1: i32) -> (i32, i32) {
    %c0_i32 = arith.constant 0 : i32
    %c0_i32_0 = arith.constant 0 : i32
    %c0_i32_1 = arith.constant 0 : i32
    return %c0_i32, %c0_i32_0 : i32, i32
  }
  func.func @transform_7(%arg0: i32, %arg1: i32) -> (i32, i32) {
    %c0_i32 = arith.constant 0 : i32
    %c0_i32_0 = arith.constant 0 : i32
    return %arg0, %c0_i32 : i32, i32
  }
}

</mosaic_0001>

<llo_original>
// kernel: tpu_custom_call.1
$region0: #{tpu_custom_call.1}
  #allocation0 [shape = 'u32[]', space=smem, size = 0x4, offset = 0x4, fixed_abs, tag = 'smem constant byte address 0x4 - core index']
  #allocation1 [shape = 'u32[144,128]{1,0:T(1,128)}', space=vmem, size = 0x12000, scoped, tag = 'internal scratch']
  #allocation2 [shape = 'bf16[32,256]{1,0:T(16,128)(2,1)}', space=vmem, size = 0x4000, scoped, tag = 'scratch operand']
  %s0 = inlined_call_operand.hbm [shape: s8[32,256], index: 0, kind: input, shape index: {}]
  %s1 = inlined_call_operand.hbm [shape: s8[128,512], index: 1, kind: input, shape index: {}]
  %s2 = inlined_call_operand.vmem [shape: f32[1,512], index: 2, kind: input, shape index: {}]
  %s3 = inlined_call_operand.hbm [shape: s8[128,512], index: 3, kind: input, shape index: {}]
  %s4 = inlined_call_operand.vmem [shape: f32[1,512], index: 4, kind: input, shape index: {}]
  %s5 = inlined_call_operand.hbm [shape: s8[512,128], index: 5, kind: input, shape index: {}]
  %s6 = inlined_call_operand.vmem [shape: f32[1,256], index: 6, kind: input, shape index: {}]
  %s7 = inlined_call_operand.hbm [shape: f32[32,256], index: 7, kind: output, shape index: {}]
  %s8 = sld [smem:[#allocation0]]
  $region93: #{tpu_custom_call.1} parent=0
    _
  %s10 = ssub.s32 1, %s8
  %s11 = scalar_select 0, %s10, %s8
  $region1: #{tpu_custom_call.1} parent=0
    #allocation3 [shape = 'u8[8192]{0}', space=vmem, size = 0x2000, scoped, tag = 'input window, operand 0, single buffered']
    #allocation4 [shape = 's32[2]{0}', space=sflag, size = 0x8, scoped, tag = 'scoped memory for tpu_custom_call.1']
    #allocation5 [shape = 's32[2]{0}', space=sflag, size = 0x8, scoped, tag = 'scoped memory for tpu_custom_call.1']
    #allocation6 [shape = 'u8[65536]{0}', space=vmem, size = 0x10000, scoped, tag = 'input window, operand 1']
    #allocation7 [shape = 's32[2]{0}', space=sflag, size = 0x8, scoped, tag = 'scoped memory for tpu_custom_call.1']
    #allocation8 [shape = 'u8[65536]{0}', space=vmem, size = 0x10000, scoped, tag = 'input window, operand 3']
    #allocation9 [shape = 'u8[65536]{0}', space=vmem, size = 0x10000, scoped, tag = 'input window, operand 5']
    #allocation10 [shape = 's32[2]{0}', space=sflag, size = 0x8, scoped, tag = 'scoped memory for tpu_custom_call.1']
    #allocation11 [shape = 'u8[32768]{0}', space=vmem, size = 0x8000, scoped, tag = 'output window, operand 0, single buffered']
    %12 = vsyncpa [#allocation4], 0
    %13 = vsyncpa [#allocation7], 0
    %s14 = scalar_lea.sflag [#allocation7], 1
    %15 = vsyncpa %s14, 0
    %16 = vsyncpa [#allocation10], 0
    %s17 = scalar_lea.sflag [#allocation10], 1
    %18 = vsyncpa %s17, 0
    %19 = vsyncpa [#allocation5], 0
    loop: start=0, step=1, limit=4
    $region2: #{tpu_custom_call.1} parent=1 // loop_pre_header
      _
    $region3: #{tpu_custom_call.1} parent=1 // loop_header
      %s21 = sphi 0, %s25
      %p22 = scmp.ge.s32.totalorder %s21, 4
      %s28 = sphi 0, %s40
      %s29 = sphi 0, %s36
      %s30 = sphi 0, %s28
      %s31 = sphi 0, %s29
      %s32 = sphi 0, %s30
      %s33 = sphi 0, %s31
      %s43 = sphi 0, %s45
      %s46 = sphi 0, %s43
      %s47 = sphi 0, %s46
      %s63 = sphi 0, %s47
      %s69 = sphi 0, %s71
      %s72 = sphi 0, %s69
      %s73 = sphi 0, %s72
      %s89 = sphi 0, %s73
      %s95 = sphi 0, %s97
      %s98 = sphi 0, %s95
      %s99 = sphi 0, %s98
      %s115 = sphi 0, %s99
      %s121 = sphi 0, %s123
      %s124 = sphi 0, %s121
      %s125 = sphi 0, %s124
      %s141 = sphi 0, %s125
      %s147 = sphi 0, %s149
      %s150 = sphi 0, %s147
      %s151 = sphi 0, %s150
      %s167 = sphi 0, %s151
      %s173 = sphi 0, %s175
      %s176 = sphi 0, %s173
      %s177 = sphi 0, %s176
      %s193 = sphi 0, %s177
      %s197 = sphi 0, %s197
      %s199 = sphi 0, %s197
      %s200 = sphi 0, %s199
      %s214 = sphi 0, %s200
      %s220 = sphi 0, %s222
      %s223 = sphi 0, %s220
      %s224 = sphi 0, %s223
      %s240 = sphi 0, %s224
    $region4: #{tpu_custom_call.1} parent=1 // loop_header_branch
      %24 = sbr.rel (%p22) target = $region8
    $region5: #{tpu_custom_call.1} parent=1 // loop_body
      %s26 = ssub.s32 %s21, 1
      %s27 = ssub.s32 %s21, 2
      %s34 = sadd.s32 1, %s29
      %p35 = scmp.ge.s32.totalorder %s34, 2
      %s36 = scalar_select %p35, 0, %s34
      %s37 = sadd.s32 1, %s28
      %s38 = scalar_select %p35, %s37, %s28
      %p39 = scmp.ge.s32.totalorder %s38, 1
      %s40 = scalar_select %p39, 0, %s38
      %s41 = ssub.s32 %s28, %s40
      %p42 = scmp.eq.s32.totalorder %s41, 0
      %s44 = sadd.s32 %s43, 1
      %s45 = scalar_select %p42, %s43, %s44
      %p48 = pneg %p42
      %p49 = scmp.eq.s32.totalorder %s21, 1
      %p50 = por %p48, %p49
      %p51 = scmp.ne.s32.totalorder %s43, %s46
      %p52 = scmp.eq.s32.totalorder %s21, 0
      %p53 = por %p51, %p52
      %p54 = scmp.ne.s32.totalorder %s43, %s46
      %p55 = scmp.eq.s32.totalorder %s26, 1
      %p56 = por %p54, %p55
      %p57 = scmp.ne.s32.totalorder %s46, %s47
      %p58 = scmp.eq.s32.totalorder %s26, 0
      %p59 = por %p57, %p58
      %p60 = scmp.ne.s32.totalorder %s46, %s47
      %p61 = scmp.eq.s32.totalorder %s27, 1
      %p62 = por %p60, %p61
      %p64 = scmp.ne.s32.totalorder %s47, %s63
      %p65 = scmp.eq.s32.totalorder %s27, 0
      %p66 = por %p64, %p65
      %s67 = ssub.s32 %s29, %s36
      %p68 = scmp.eq.s32.totalorder %s67, 0
      %s70 = sadd.s32 %s69, 1
      %s71 = scalar_select %p68, %s69, %s70
      %p74 = pneg %p68
      %p75 = scmp.eq.s32.totalorder %s21, 1
      %p76 = por %p74, %p75
      %p77 = scmp.ne.s32.totalorder %s69, %s72
      %p78 = scmp.eq.s32.totalorder %s21, 0
      %p79 = por %p77, %p78
      %p80 = scmp.ne.s32.totalorder %s69, %s72
      %p81 = scmp.eq.s32.totalorder %s26, 1
      %p82 = por %p80, %p81
      %p83 = scmp.ne.s32.totalorder %s72, %s73
      %p84 = scmp.eq.s32.totalorder %s26, 0
      %p85 = por %p83, %p84
      %p86 = scmp.ne.s32.totalorder %s72, %s73
      %p87 = scmp.eq.s32.totalorder %s27, 1
      %p88 = por %p86, %p87
      %p90 = scmp.ne.s32.totalorder %s73, %s89
      %p91 = scmp.eq.s32.totalorder %s27, 0
      %p92 = por %p90, %p91
      %s93 = ssub.s32 %s29, %s36
      %p94 = scmp.eq.s32.totalorder %s93, 0
      %s96 = sadd.s32 %s95, 1
      %s97 = scalar_select %p94, %s95, %s96
      %p100 = pneg %p94
      %p101 = scmp.eq.s32.totalorder %s21, 1
      %p102 = por %p100, %p101
      %p103 = scmp.ne.s32.totalorder %s95, %s98
      %p104 = scmp.eq.s32.totalorder %s21, 0
      %p105 = por %p103, %p104
      %p106 = scmp.ne.s32.totalorder %s95, %s98
      %p107 = scmp.eq.s32.totalorder %s26, 1
      %p108 = por %p106, %p107
      %p109 = scmp.ne.s32.totalorder %s98, %s99
      %p110 = scmp.eq.s32.totalorder %s26, 0
      %p111 = por %p109, %p110
      %p112 = scmp.ne.s32.totalorder %s98, %s99
      %p113 = scmp.eq.s32.totalorder %s27, 1
      %p114 = por %p112, %p113
      %p116 = scmp.ne.s32.totalorder %s99, %s115
      %p117 = scmp.eq.s32.totalorder %s27, 0
      %p118 = por %p116, %p117
      %s119 = ssub.s32 %s29, %s36
      %p120 = scmp.eq.s32.totalorder %s119, 0
      %s122 = sadd.s32 %s121, 1
      %s123 = scalar_select %p120, %s121, %s122
      %p126 = pneg %p120
      %p127 = scmp.eq.s32.totalorder %s21, 1
      %p128 = por %p126, %p127
      %p129 = scmp.ne.s32.totalorder %s121, %s124
      %p130 = scmp.eq.s32.totalorder %s21, 0
      %p131 = por %p129, %p130
      %p132 = scmp.ne.s32.totalorder %s121, %s124
      %p133 = scmp.eq.s32.totalorder %s26, 1
      %p134 = por %p132, %p133
      %p135 = scmp.ne.s32.totalorder %s124, %s125
      %p136 = scmp.eq.s32.totalorder %s26, 0
      %p137 = por %p135, %p136
      %p138 = scmp.ne.s32.totalorder %s124, %s125
      %p139 = scmp.eq.s32.totalorder %s27, 1
      %p140 = por %p138, %p139
      %p142 = scmp.ne.s32.totalorder %s125, %s141
      %p143 = scmp.eq.s32.totalorder %s27, 0
      %p144 = por %p142, %p143
      %s145 = ssub.s32 %s29, %s36
      %p146 = scmp.eq.s32.totalorder %s145, 0
      %s148 = sadd.s32 %s147, 1
      %s149 = scalar_select %p146, %s147, %s148
      %p152 = pneg %p146
      %p153 = scmp.eq.s32.totalorder %s21, 1
      %p154 = por %p152, %p153
      %p155 = scmp.ne.s32.totalorder %s147, %s150
      %p156 = scmp.eq.s32.totalorder %s21, 0
      %p157 = por %p155, %p156
      %p158 = scmp.ne.s32.totalorder %s147, %s150
      %p159 = scmp.eq.s32.totalorder %s26, 1
      %p160 = por %p158, %p159
      %p161 = scmp.ne.s32.totalorder %s150, %s151
      %p162 = scmp.eq.s32.totalorder %s26, 0
      %p163 = por %p161, %p162
      %p164 = scmp.ne.s32.totalorder %s150, %s151
      %p165 = scmp.eq.s32.totalorder %s27, 1
      %p166 = por %p164, %p165
      %p168 = scmp.ne.s32.totalorder %s151, %s167
      %p169 = scmp.eq.s32.totalorder %s27, 0
      %p170 = por %p168, %p169
      %s171 = ssub.s32 %s29, %s36
      %p172 = scmp.eq.s32.totalorder %s171, 0
      %s174 = sadd.s32 %s173, 1
      %s175 = scalar_select %p172, %s173, %s174
      %p178 = pneg %p172
      %p179 = scmp.eq.s32.totalorder %s21, 1
      %p180 = por %p178, %p179
      %p181 = scmp.ne.s32.totalorder %s173, %s176
      %p182 = scmp.eq.s32.totalorder %s21, 0
      %p183 = por %p181, %p182
      %p184 = scmp.ne.s32.totalorder %s173, %s176
      %p185 = scmp.eq.s32.totalorder %s26, 1
      %p186 = por %p184, %p185
      %p187 = scmp.ne.s32.totalorder %s176, %s177
      %p188 = scmp.eq.s32.totalorder %s26, 0
      %p189 = por %p187, %p188
      %p190 = scmp.ne.s32.totalorder %s176, %s177
      %p191 = scmp.eq.s32.totalorder %s27, 1
      %p192 = por %p190, %p191
      %p194 = scmp.ne.s32.totalorder %s177, %s193
      %p195 = scmp.eq.s32.totalorder %s27, 0
      %p196 = por %p194, %p195
      %s198 = sadd.s32 %s197, 1
      %p201 = scmp.eq.s32.totalorder %s21, 1
      %p202 = scmp.ne.s32.totalorder %s197, %s199
      %p203 = scmp.eq.s32.totalorder %s21, 0
      %p204 = por %p202, %p203
      %p205 = scmp.ne.s32.totalorder %s197, %s199
      %p206 = scmp.eq.s32.totalorder %s26, 1
      %p207 = por %p205, %p206
      %p208 = scmp.ne.s32.totalorder %s199, %s200
      %p209 = scmp.eq.s32.totalorder %s26, 0
      %p210 = por %p208, %p209
      %p211 = scmp.ne.s32.totalorder %s199, %s200
      %p212 = scmp.eq.s32.totalorder %s27, 1
      %p213 = por %p211, %p212
      %p215 = scmp.ne.s32.totalorder %s200, %s214
      %p216 = scmp.eq.s32.totalorder %s27, 0
      %p217 = por %p215, %p216
      %s218 = ssub.s32 %s28, %s40
      %p219 = scmp.eq.s32.totalorder %s218, 0
      %s221 = sadd.s32 %s220, 1
      %s222 = scalar_select %p219, %s220, %s221
      %p225 = pneg %p219
      %p226 = scmp.eq.s32.totalorder %s21, 1
      %p227 = por %p225, %p226
      %p228 = scmp.ne.s32.totalorder %s220, %s223
      %p229 = scmp.eq.s32.totalorder %s21, 0
      %p230 = por %p228, %p229
      %p231 = scmp.ne.s32.totalorder %s220, %s223
      %p232 = scmp.eq.s32.totalorder %s26, 1
      %p233 = por %p231, %p232
      %p234 = scmp.ne.s32.totalorder %s223, %s224
      %p235 = scmp.eq.s32.totalorder %s26, 0
      %p236 = por %p234, %p235
      %p237 = scmp.ne.s32.totalorder %s223, %s224
      %p238 = scmp.eq.s32.totalorder %s27, 1
      %p239 = por %p237, %p238
      %p241 = scmp.ne.s32.totalorder %s224, %s240
      %p242 = scmp.eq.s32.totalorder %s27, 0
      %p243 = por %p241, %p242
      %p244 = scmp.le.s32.totalorder 1, %s21
      %p245 = scmp.lt.s32.totalorder %s21, 3
      %p246 = pnand %p244, %p245
      %p247 = pneg %p246
      // Predicated region
      $region9: #{tpu_custom_call.1} parent=5 // pred_check
        _
      $region10: #{tpu_custom_call.1} parent=5 // pred_check_branch
        %249 = sbr.rel (%p246) target = $region12
      $region11: #{tpu_custom_call.1} parent=5 // pred_region
        %s250 = ssub.s32 %s21, 1
        // Predicated region
        $region13: #{tpu_custom_call.1} parent=11 // pred_check
          %p251 = pneg %p59
        $region14: #{tpu_custom_call.1} parent=11 // pred_check_branch
          %253 = sbr.rel (%p251) target = $region16
        $region15: #{tpu_custom_call.1} parent=11 // pred_region
          %s255 = ssub.s32 256, 256
          %256 = vsyncadd [#allocation4], %s255
          %s257 = smul.addr %s30, 2
          %s258 = smul.addr %s257, 128
          %s259 = scalar_lea.hbm %s0, %s258
          %s261 = sshll.u32 [#allocation3], 4
          %s262 = int_to_ptr.vmem [resolvable:$true] %s261
          %264 = dma.hbm_to_vmem [thread:$0]  %s259, 256, %s262, [#allocation4]
        $region16: #{tpu_custom_call.1} parent=11 // pred_fallthru
          _
        // Predicated region
        $region17: #{tpu_custom_call.1} parent=11 // pred_check
          %p265 = pneg %p210
        $region18: #{tpu_custom_call.1} parent=11 // pred_check_branch
          %267 = sbr.rel (%p265) target = $region20
        $region19: #{tpu_custom_call.1} parent=11 // pred_region
          _
        $region20: #{tpu_custom_call.1} parent=11 // pred_fallthru
          _
      $region12: #{tpu_custom_call.1} parent=5 // pred_fallthru
        _
      %p268 = scmp.lt.s32.totalorder %s21, 2
      // Predicated region
      $region21: #{tpu_custom_call.1} parent=5 // pred_check
        %p269 = pneg %p268
      $region22: #{tpu_custom_call.1} parent=5 // pred_check_branch
        %271 = sbr.rel (%p269) target = $region24
      $region23: #{tpu_custom_call.1} parent=5 // pred_region
        // Predicated region
        $region25: #{tpu_custom_call.1} parent=23 // pred_check
          %p272 = pneg %p79
        $region26: #{tpu_custom_call.1} parent=23 // pred_check_branch
          %274 = sbr.rel (%p272) target = $region28
        $region27: #{tpu_custom_call.1} parent=23 // pred_region
          %s275 = sand.u32 %s21, 1
          %s276 = scalar_lea.sflag [#allocation7], %s275
          %s277 = sand.u32 %s69, 1
          %s278 = smul.addr %s277, 64
          %s279 = scalar_lea.vmem [#allocation6], %s278
          %s280 = smul.u32 2, %s29
          %s282 = ssub.s32 1024, 1024
          %283 = vsyncadd %s276, %s282
          %s284 = smul.addr %s280, 128
          %s285 = scalar_lea.hbm %s1, %s284
          %s286 = sshll.u32 %s279, 4
          %s287 = int_to_ptr.vmem [resolvable:$true] %s286
          %292 = dma.hbm_to_vmem [thread:$0]  %s285, 1024, %s287, %s276, 512, 256, 16
        $region28: #{tpu_custom_call.1} parent=23 // pred_fallthru
          _
        // Predicated region
        $region29: #{tpu_custom_call.1} parent=23 // pred_check
          %p293 = pneg %p105
        $region30: #{tpu_custom_call.1} parent=23 // pred_check_branch
          %295 = sbr.rel (%p293) target = $region32
        $region31: #{tpu_custom_call.1} parent=23 // pred_region
          %s296 = smul.u32 2, %s29
          %p297 = scmp.lt.s32.totalorder %s296, 3
          %s298 = scalar_select %p297, %s296, 3
          %s299 = scalar_lea.vmem %s2, %s298
          %s300 = smul.u32 2, %s29
        $region32: #{tpu_custom_call.1} parent=23 // pred_fallthru
          _
        // Predicated region
        $region33: #{tpu_custom_call.1} parent=23 // pred_check
          %p301 = pneg %p131
        $region34: #{tpu_custom_call.1} parent=23 // pred_check_branch
          %303 = sbr.rel (%p301) target = $region36
        $region35: #{tpu_custom_call.1} parent=23 // pred_region
          %s304 = sand.u32 %s21, 1
          %s305 = scalar_lea.sflag [#allocation7], %s304
          %s306 = sand.u32 %s121, 1
          %s307 = smul.addr %s306, 64
          %s308 = scalar_lea.vmem [#allocation8], %s307
          %s309 = smul.u32 2, %s29
          %s311 = ssub.s32 1024, 1024
          %312 = vsyncadd %s305, %s311
          %s313 = smul.addr %s309, 128
          %s314 = scalar_lea.hbm %s3, %s313
          %s315 = sshll.u32 %s308, 4
          %s316 = int_to_ptr.vmem [resolvable:$true] %s315
          %321 = dma.hbm_to_vmem [thread:$0]  %s314, 1024, %s316, %s305, 512, 256, 16
        $region36: #{tpu_custom_call.1} parent=23 // pred_fallthru
          _
        // Predicated region
        $region37: #{tpu_custom_call.1} parent=23 // pred_check
          %p322 = pneg %p157
        $region38: #{tpu_custom_call.1} parent=23 // pred_check_branch
          %324 = sbr.rel (%p322) target = $region40
        $region39: #{tpu_custom_call.1} parent=23 // pred_region
          %s325 = smul.u32 2, %s29
          %p326 = scmp.lt.s32.totalorder %s325, 3
          %s327 = scalar_select %p326, %s325, 3
          %s328 = scalar_lea.vmem %s4, %s327
          %s329 = smul.u32 2, %s29
        $region40: #{tpu_custom_call.1} parent=23 // pred_fallthru
          _
        // Predicated region
        $region41: #{tpu_custom_call.1} parent=23 // pred_check
          %p330 = pneg %p183
        $region42: #{tpu_custom_call.1} parent=23 // pred_check_branch
          %332 = sbr.rel (%p330) target = $region44
        $region43: #{tpu_custom_call.1} parent=23 // pred_region
          %s333 = sand.u32 %s173, 1
          %s334 = scalar_lea.sflag [#allocation10], %s333
          %s335 = sand.u32 %s173, 1
          %s336 = smul.addr %s335, 64
          %s337 = scalar_lea.vmem [#allocation9], %s336
          %s338 = smul.u32 8, %s29
          %s340 = ssub.s32 1024, 1024
          %341 = vsyncadd %s334, %s340
          %s342 = smul.addr %s338, 128
          %s343 = scalar_lea.hbm %s5, %s342
          %s344 = sshll.u32 %s337, 4
          %s345 = int_to_ptr.vmem [resolvable:$true] %s344
          %350 = dma.hbm_to_vmem [thread:$0]  %s343, 1024, %s345, %s334, 128, 128, 8
        $region44: #{tpu_custom_call.1} parent=23 // pred_fallthru
          _
      $region24: #{tpu_custom_call.1} parent=5 // pred_fallthru
        _
      %p351 = scmp.le.s32.totalorder 1, %s21
      %p352 = scmp.lt.s32.totalorder %s21, 3
      %p353 = pnand %p351, %p352
      %p354 = pneg %p353
      // Predicated region
      $region45: #{tpu_custom_call.1} parent=5 // pred_check
        _
      $region46: #{tpu_custom_call.1} parent=5 // pred_check_branch
        %356 = sbr.rel (%p353) target = $region48
      $region47: #{tpu_custom_call.1} parent=5 // pred_region
        %s357 = ssub.s32 %s21, 1
        // Predicated region
        $region49: #{tpu_custom_call.1} parent=47 // pred_check
          %p358 = pneg %p59
        $region50: #{tpu_custom_call.1} parent=47 // pred_check_branch
          %360 = sbr.rel (%p358) target = $region52
        $region51: #{tpu_custom_call.1} parent=47 // pred_region
          %361 = dma.done [#allocation4], 256
        $region52: #{tpu_custom_call.1} parent=47 // pred_fallthru
          _
        %s362 = sand.u32 %s26, 1
        %s363 = scalar_lea.sflag [#allocation7], %s362
        %s364 = sand.u32 %s72, 1
        %s365 = smul.addr %s364, 64
        %s366 = scalar_lea.vmem [#allocation6], %s365
        // Predicated region
        $region53: #{tpu_custom_call.1} parent=47 // pred_check
          %p367 = pneg %p85
        $region54: #{tpu_custom_call.1} parent=47 // pred_check_branch
          %369 = sbr.rel (%p367) target = $region56
        $region55: #{tpu_custom_call.1} parent=47 // pred_region
          %370 = dma.done %s363, 1024
        $region56: #{tpu_custom_call.1} parent=47 // pred_fallthru
          _
        %s371 = sand.u32 %s26, 1
        %s372 = scalar_lea.sflag [#allocation7], %s371
        %s373 = sand.u32 %s124, 1
        %s374 = smul.addr %s373, 64
        %s375 = scalar_lea.vmem [#allocation8], %s374
        // Predicated region
        $region57: #{tpu_custom_call.1} parent=47 // pred_check
          %p376 = pneg %p137
        $region58: #{tpu_custom_call.1} parent=47 // pred_check_branch
          %378 = sbr.rel (%p376) target = $region60
        $region59: #{tpu_custom_call.1} parent=47 // pred_region
          %379 = dma.done %s372, 1024
        $region60: #{tpu_custom_call.1} parent=47 // pred_fallthru
          _
        %s380 = sand.u32 %s176, 1
        %s381 = scalar_lea.sflag [#allocation10], %s380
        %s382 = sand.u32 %s176, 1
        %s383 = smul.addr %s382, 64
        %s384 = scalar_lea.vmem [#allocation9], %s383
        // Predicated region
        $region61: #{tpu_custom_call.1} parent=47 // pred_check
          %p385 = pneg %p189
        $region62: #{tpu_custom_call.1} parent=47 // pred_check_branch
          %387 = sbr.rel (%p385) target = $region64
        $region63: #{tpu_custom_call.1} parent=47 // pred_region
          %388 = dma.done %s381, 1024
        $region64: #{tpu_custom_call.1} parent=47 // pred_fallthru
          _
        %p389 = pneg %p59
        %p390 = pneg %p56
        %s391 = sand.u32 %s26, 1
        %s392 = scalar_lea.sflag [#allocation7], %s391
        %s393 = sand.u32 %s72, 1
        %s394 = smul.addr %s393, 64
        %s395 = scalar_lea.vmem [#allocation6], %s394
        %p396 = pneg %p85
        %p397 = pneg %p82
        %s398 = smul.u32 2, %s31
        %p399 = scmp.lt.s32.totalorder %s398, 3
        %s400 = scalar_select %p399, %s398, 3
        %s401 = scalar_lea.vmem %s2, %s400
        %p402 = pneg %p111
        %p403 = pneg %p108
        %s404 = sand.u32 %s26, 1
        %s405 = scalar_lea.sflag [#allocation7], %s404
        %s406 = sand.u32 %s124, 1
        %s407 = smul.addr %s406, 64
        %s408 = scalar_lea.vmem [#allocation8], %s407
        %p409 = pneg %p137
        %p410 = pneg %p134
        %s411 = smul.u32 2, %s31
        %p412 = scmp.lt.s32.totalorder %s411, 3
        %s413 = scalar_select %p412, %s411, 3
        %s414 = scalar_lea.vmem %s4, %s413
        %p415 = pneg %p163
        %p416 = pneg %p160
        %s417 = sand.u32 %s176, 1
        %s418 = scalar_lea.sflag [#allocation10], %s417
        %s419 = sand.u32 %s176, 1
        %s420 = smul.addr %s419, 64
        %s421 = scalar_lea.vmem [#allocation9], %s420
        %p422 = pneg %p189
        %p423 = pneg %p186
        %p424 = pneg %p210
        %p425 = pneg %p207
        %p426 = pneg %p236
        %p427 = pneg %p233
        %s428 = smul.u32 2, %s31
        %s429 = smul.u32 2, %s31
        %p430 = scmp.lt.s32.totalorder %s429, 3
        %s431 = scalar_select %p430, %s429, 3
        %s432 = scalar_lea.vmem %s2, %s431
        %s433 = smul.u32 2, %s31
        %s434 = smul.u32 2, %s31
        %s435 = smul.u32 2, %s31
        %p436 = scmp.lt.s32.totalorder %s435, 3
        %s437 = scalar_select %p436, %s435, 3
        %s438 = scalar_lea.vmem %s4, %s437
        %s439 = smul.u32 2, %s31
        %s440 = smul.u32 8, %s31
        %s441 = smul.u32 4, %s30
        %p443 = scmp.eq.s32.totalorder %s31, 0
        // Predicated region
        $region65: #{tpu_custom_call.1} parent=47 // pred_check
          %p444 = pneg %p443
        $region66: #{tpu_custom_call.1} parent=47 // pred_check_branch
          %446 = sbr.rel (%p444) target = $region68
        $region67: #{tpu_custom_call.1} parent=47 // pred_region
          %v447 = vld [vmem:[#allocation3] sm:$0xff]
          %v448 = vld [vmem:[#allocation3 + $0x8] sm:$0xff]
          %v449 = vunpack.c.l.s8.bf16 %v447
          %v450 = vunpack.c.l.s8.bf16 %v448
          %v451 = vunpack.c.h.s8.bf16 %v447
          %v452 = vunpack.c.h.s8.bf16 %v448
          %453 = vst [vmem:[#allocation2] sm:$0xff] %v449
          %454 = vst [vmem:[#allocation2 + $0x8] sm:$0xff] %v450
          %455 = vst [vmem:[#allocation2 + $0x10] sm:$0xff] %v451
          %456 = vst [vmem:[#allocation2 + $0x18] sm:$0xff] %v452
        $region68: #{tpu_custom_call.1} parent=47 // pred_fallthru
          _
        %v457 = vld [vmem:[#allocation2] sm:$0xff]
        %v458 = vld [vmem:[#allocation2 + $0x8] sm:$0xff]
        %v459 = vld [vmem:[#allocation2 + $0x10] sm:$0xff]
        %v460 = vld [vmem:[#allocation2 + $0x18] sm:$0xff]
        %v461 = vld [vmem:[%s366] sm:$0xff]
        %v462 = vld [vmem:[%s366 + $0x8] sm:$0xff]
        %v463 = vld [vmem:[%s366 + $0x10] sm:$0xff]
        %v464 = vld [vmem:[%s366 + $0x18] sm:$0xff]
        %v465 = vld [vmem:[%s366 + $0x20] sm:$0xff]
        %v466 = vld [vmem:[%s366 + $0x28] sm:$0xff]
        %v467 = vld [vmem:[%s366 + $0x30] sm:$0xff]
        %v468 = vld [vmem:[%s366 + $0x38] sm:$0xff]
        %v469 = vunpack.c.0.s8 %v461
        %v470 = vunpack.c.0.s8 %v462
        %v471 = vunpack.c.1.s8 %v461
        %v472 = vunpack.c.1.s8 %v462
        %v473 = vunpack.c.2.s8 %v461
        %v474 = vunpack.c.2.s8 %v462
        %v475 = vunpack.c.3.s8 %v461
        %v476 = vunpack.c.3.s8 %v462
        %v477 = vunpack.c.0.s8 %v463
        %v478 = vunpack.c.0.s8 %v464
        %v479 = vunpack.c.1.s8 %v463
        %v480 = vunpack.c.1.s8 %v464
        %v481 = vunpack.c.2.s8 %v463
        %v482 = vunpack.c.2.s8 %v464
        %v483 = vunpack.c.3.s8 %v463
        %v484 = vunpack.c.3.s8 %v464
        %v485 = vunpack.c.0.s8 %v465
        %v486 = vunpack.c.0.s8 %v466
        %v487 = vunpack.c.1.s8 %v465
        %v488 = vunpack.c.1.s8 %v466
        %v489 = vunpack.c.2.s8 %v465
        %v490 = vunpack.c.2.s8 %v466
        %v491 = vunpack.c.3.s8 %v465
        %v492 = vunpack.c.3.s8 %v466
        %v493 = vunpack.c.0.s8 %v467
        %v494 = vunpack.c.0.s8 %v468
        %v495 = vunpack.c.1.s8 %v467
        %v496 = vunpack.c.1.s8 %v468
        %v497 = vunpack.c.2.s8 %v467
        %v498 = vunpack.c.2.s8 %v468
        %v499 = vunpack.c.3.s8 %v467
        %v500 = vunpack.c.3.s8 %v468
        %v501 = vand.u32 %v469, 15
        %v502 = vand.u32 %v470, 15
        %v503 = vand.u32 %v471, 15
        %v504 = vand.u32 %v472, 15
        %v505 = vand.u32 %v473, 15
        %v506 = vand.u32 %v474, 15
        %v507 = vand.u32 %v475, 15
        %v508 = vand.u32 %v476, 15
        %v509 = vand.u32 %v477, 15
        %v510 = vand.u32 %v478, 15
        %v511 = vand.u32 %v479, 15
        %v512 = vand.u32 %v480, 15
        %v513 = vand.u32 %v481, 15
        %v514 = vand.u32 %v482, 15
        %v515 = vand.u32 %v483, 15
        %v516 = vand.u32 %v484, 15
        %v517 = vand.u32 %v485, 15
        %v518 = vand.u32 %v486, 15
        %v519 = vand.u32 %v487, 15
        %v520 = vand.u32 %v488, 15
        %v521 = vand.u32 %v489, 15
        %v522 = vand.u32 %v490, 15
        %v523 = vand.u32 %v491, 15
        %v524 = vand.u32 %v492, 15
        %v525 = vand.u32 %v493, 15
        %v526 = vand.u32 %v494, 15
        %v527 = vand.u32 %v495, 15
        %v528 = vand.u32 %v496, 15
        %v529 = vand.u32 %v497, 15
        %v530 = vand.u32 %v498, 15
        %v531 = vand.u32 %v499, 15
        %v532 = vand.u32 %v500, 15
        %v533 = vxor.u32 %v501, 8
        %v534 = vxor.u32 %v502, 8
        %v535 = vxor.u32 %v503, 8
        %v536 = vxor.u32 %v504, 8
        %v537 = vxor.u32 %v505, 8
        %v538 = vxor.u32 %v506, 8
        %v539 = vxor.u32 %v507, 8
        %v540 = vxor.u32 %v508, 8
        %v541 = vxor.u32 %v509, 8
        %v542 = vxor.u32 %v510, 8
        %v543 = vxor.u32 %v511, 8
        %v544 = vxor.u32 %v512, 8
        %v545 = vxor.u32 %v513, 8
        %v546 = vxor.u32 %v514, 8
        %v547 = vxor.u32 %v515, 8
        %v548 = vxor.u32 %v516, 8
        %v549 = vxor.u32 %v517, 8
        %v550 = vxor.u32 %v518, 8
        %v551 = vxor.u32 %v519, 8
        %v552 = vxor.u32 %v520, 8
        %v553 = vxor.u32 %v521, 8
        %v554 = vxor.u32 %v522, 8
        %v555 = vxor.u32 %v523, 8
        %v556 = vxor.u32 %v524, 8
        %v557 = vxor.u32 %v525, 8
        %v558 = vxor.u32 %v526, 8
        %v559 = vxor.u32 %v527, 8
        %v560 = vxor.u32 %v528, 8
        %v561 = vxor.u32 %v529, 8
        %v562 = vxor.u32 %v530, 8
        %v563 = vxor.u32 %v531, 8
        %v564 = vxor.u32 %v532, 8
        %v565 = vsub.s32 %v533, 8
        %v566 = vsub.s32 %v534, 8
        %v567 = vsub.s32 %v535, 8
        %v568 = vsub.s32 %v536, 8
        %v569 = vsub.s32 %v537, 8
        %v570 = vsub.s32 %v538, 8
        %v571 = vsub.s32 %v539, 8
        %v572 = vsub.s32 %v540, 8
        %v573 = vsub.s32 %v541, 8
        %v574 = vsub.s32 %v542, 8
        %v575 = vsub.s32 %v543, 8
        %v576 = vsub.s32 %v544, 8
        %v577 = vsub.s32 %v545, 8
        %v578 = vsub.s32 %v546, 8
        %v579 = vsub.s32 %v547, 8
        %v580 = vsub.s32 %v548, 8
        %v581 = vsub.s32 %v549, 8
        %v582 = vsub.s32 %v550, 8
        %v583 = vsub.s32 %v551, 8
        %v584 = vsub.s32 %v552, 8
        %v585 = vsub.s32 %v553, 8
        %v586 = vsub.s32 %v554, 8
        %v587 = vsub.s32 %v555, 8
        %v588 = vsub.s32 %v556, 8
        %v589 = vsub.s32 %v557, 8
        %v590 = vsub.s32 %v558, 8
        %v591 = vsub.s32 %v559, 8
        %v592 = vsub.s32 %v560, 8
        %v593 = vsub.s32 %v561, 8
        %v594 = vsub.s32 %v562, 8
        %v595 = vsub.s32 %v563, 8
        %v596 = vsub.s32 %v564, 8
        %v597 = vshra.s32 %v469, 4
        %v598 = vshra.s32 %v470, 4
        %v599 = vshra.s32 %v471, 4
        %v600 = vshra.s32 %v472, 4
        %v601 = vshra.s32 %v473, 4
        %v602 = vshra.s32 %v474, 4
        %v603 = vshra.s32 %v475, 4
        %v604 = vshra.s32 %v476, 4
        %v605 = vshra.s32 %v477, 4
        %v606 = vshra.s32 %v478, 4
        %v607 = vshra.s32 %v479, 4
        %v608 = vshra.s32 %v480, 4
        %v609 = vshra.s32 %v481, 4
        %v610 = vshra.s32 %v482, 4
        %v611 = vshra.s32 %v483, 4
        %v612 = vshra.s32 %v484, 4
        %v613 = vshra.s32 %v485, 4
        %v614 = vshra.s32 %v486, 4
        %v615 = vshra.s32 %v487, 4
        %v616 = vshra.s32 %v488, 4
        %v617 = vshra.s32 %v489, 4
        %v618 = vshra.s32 %v490, 4
        %v619 = vshra.s32 %v491, 4
        %v620 = vshra.s32 %v492, 4
        %v621 = vshra.s32 %v493, 4
        %v622 = vshra.s32 %v494, 4
        %v623 = vshra.s32 %v495, 4
        %v624 = vshra.s32 %v496, 4
        %v625 = vshra.s32 %v497, 4
        %v626 = vshra.s32 %v498, 4
        %v627 = vshra.s32 %v499, 4
        %v628 = vshra.s32 %v500, 4
        %v629 = vcvt.s32.f32 %v565
        %v630 = vcvt.s32.f32 %v566
        %v631 = vcvt.s32.f32 %v567
        %v632 = vcvt.s32.f32 %v568
        %v633 = vcvt.s32.f32 %v569
        %v634 = vcvt.s32.f32 %v570
        %v635 = vcvt.s32.f32 %v571
        %v636 = vcvt.s32.f32 %v572
        %v637 = vcvt.s32.f32 %v573
        %v638 = vcvt.s32.f32 %v574
        %v639 = vcvt.s32.f32 %v575
        %v640 = vcvt.s32.f32 %v576
        %v641 = vcvt.s32.f32 %v577
        %v642 = vcvt.s32.f32 %v578
        %v643 = vcvt.s32.f32 %v579
        %v644 = vcvt.s32.f32 %v580
        %v645 = vcvt.s32.f32 %v581
        %v646 = vcvt.s32.f32 %v582
        %v647 = vcvt.s32.f32 %v583
        %v648 = vcvt.s32.f32 %v584
        %v649 = vcvt.s32.f32 %v585
        %v650 = vcvt.s32.f32 %v586
        %v651 = vcvt.s32.f32 %v587
        %v652 = vcvt.s32.f32 %v588
        %v653 = vcvt.s32.f32 %v589
        %v654 = vcvt.s32.f32 %v590
        %v655 = vcvt.s32.f32 %v591
        %v656 = vcvt.s32.f32 %v592
        %v657 = vcvt.s32.f32 %v593
        %v658 = vcvt.s32.f32 %v594
        %v659 = vcvt.s32.f32 %v595
        %v660 = vcvt.s32.f32 %v596
        %v661 = vpack.c.bf16 %v631, %v629
        %v662 = vpack.c.bf16 %v632, %v630
        %v663 = vpack.c.bf16 %v635, %v633
        %v664 = vpack.c.bf16 %v636, %v634
        %v665 = vpack.c.bf16 %v639, %v637
        %v666 = vpack.c.bf16 %v640, %v638
        %v667 = vpack.c.bf16 %v643, %v641
        %v668 = vpack.c.bf16 %v644, %v642
        %v669 = vpack.c.bf16 %v647, %v645
        %v670 = vpack.c.bf16 %v648, %v646
        %v671 = vpack.c.bf16 %v651, %v649
        %v672 = vpack.c.bf16 %v652, %v650
        %v673 = vpack.c.bf16 %v655, %v653
        %v674 = vpack.c.bf16 %v656, %v654
        %v675 = vpack.c.bf16 %v659, %v657
        %v676 = vpack.c.bf16 %v660, %v658
        %v677 = vcvt.s32.f32 %v597
        %v678 = vcvt.s32.f32 %v598
        %v679 = vcvt.s32.f32 %v599
        %v680 = vcvt.s32.f32 %v600
        %v681 = vcvt.s32.f32 %v601
        %v682 = vcvt.s32.f32 %v602
        %v683 = vcvt.s32.f32 %v603
        %v684 = vcvt.s32.f32 %v604
        %v685 = vcvt.s32.f32 %v605
        %v686 = vcvt.s32.f32 %v606
        %v687 = vcvt.s32.f32 %v607
        %v688 = vcvt.s32.f32 %v608
        %v689 = vcvt.s32.f32 %v609
        %v690 = vcvt.s32.f32 %v610
        %v691 = vcvt.s32.f32 %v611
        %v692 = vcvt.s32.f32 %v612
        %v693 = vcvt.s32.f32 %v613
        %v694 = vcvt.s32.f32 %v614
        %v695 = vcvt.s32.f32 %v615
        %v696 = vcvt.s32.f32 %v616
        %v697 = vcvt.s32.f32 %v617
        %v698 = vcvt.s32.f32 %v618
        %v699 = vcvt.s32.f32 %v619
        %v700 = vcvt.s32.f32 %v620
        %v701 = vcvt.s32.f32 %v621
        %v702 = vcvt.s32.f32 %v622
        %v703 = vcvt.s32.f32 %v623
        %v704 = vcvt.s32.f32 %v624
        %v705 = vcvt.s32.f32 %v625
        %v706 = vcvt.s32.f32 %v626
        %v707 = vcvt.s32.f32 %v627
        %v708 = vcvt.s32.f32 %v628
        %v709 = vpack.c.bf16 %v679, %v677
        %v710 = vpack.c.bf16 %v680, %v678
        %v711 = vpack.c.bf16 %v683, %v681
        %v712 = vpack.c.bf16 %v684, %v682
        %v713 = vpack.c.bf16 %v687, %v685
        %v714 = vpack.c.bf16 %v688, %v686
        %v715 = vpack.c.bf16 %v691, %v689
        %v716 = vpack.c.bf16 %v692, %v690
        %v717 = vpack.c.bf16 %v695, %v693
        %v718 = vpack.c.bf16 %v696, %v694
        %v719 = vpack.c.bf16 %v699, %v697
        %v720 = vpack.c.bf16 %v700, %v698
        %v721 = vpack.c.bf16 %v703, %v701
        %v722 = vpack.c.bf16 %v704, %v702
        %v723 = vpack.c.bf16 %v707, %v705
        %v724 = vpack.c.bf16 %v708, %v706
        %v725 = vld [vmem:[%s375] sm:$0xff]
        %v726 = vld [vmem:[%s375 + $0x8] sm:$0xff]
        %v727 = vld [vmem:[%s375 + $0x10] sm:$0xff]
        %v728 = vld [vmem:[%s375 + $0x18] sm:$0xff]
        %v729 = vld [vmem:[%s375 + $0x20] sm:$0xff]
        %v730 = vld [vmem:[%s375 + $0x28] sm:$0xff]
        %v731 = vld [vmem:[%s375 + $0x30] sm:$0xff]
        %v732 = vld [vmem:[%s375 + $0x38] sm:$0xff]
        %v733 = vunpack.c.0.s8 %v725
        %v734 = vunpack.c.0.s8 %v726
        %v735 = vunpack.c.1.s8 %v725
        %v736 = vunpack.c.1.s8 %v726
        %v737 = vunpack.c.2.s8 %v725
        %v738 = vunpack.c.2.s8 %v726
        %v739 = vunpack.c.3.s8 %v725
        %v740 = vunpack.c.3.s8 %v726
        %v741 = vunpack.c.0.s8 %v727
        %v742 = vunpack.c.0.s8 %v728
        %v743 = vunpack.c.1.s8 %v727
        %v744 = vunpack.c.1.s8 %v728
        %v745 = vunpack.c.2.s8 %v727
        %v746 = vunpack.c.2.s8 %v728
        %v747 = vunpack.c.3.s8 %v727
        %v748 = vunpack.c.3.s8 %v728
        %v749 = vunpack.c.0.s8 %v729
        %v750 = vunpack.c.0.s8 %v730
        %v751 = vunpack.c.1.s8 %v729
        %v752 = vunpack.c.1.s8 %v730
        %v753 = vunpack.c.2.s8 %v729
        %v754 = vunpack.c.2.s8 %v730
        %v755 = vunpack.c.3.s8 %v729
        %v756 = vunpack.c.3.s8 %v730
        %v757 = vunpack.c.0.s8 %v731
        %v758 = vunpack.c.0.s8 %v732
        %v759 = vunpack.c.1.s8 %v731
        %v760 = vunpack.c.1.s8 %v732
        %v761 = vunpack.c.2.s8 %v731
        %v762 = vunpack.c.2.s8 %v732
        %v763 = vunpack.c.3.s8 %v731
        %v764 = vunpack.c.3.s8 %v732
        %v765 = vand.u32 %v733, 15
        %v766 = vand.u32 %v734, 15
        %v767 = vand.u32 %v735, 15
        %v768 = vand.u32 %v736, 15
        %v769 = vand.u32 %v737, 15
        %v770 = vand.u32 %v738, 15
        %v771 = vand.u32 %v739, 15
        %v772 = vand.u32 %v740, 15
        %v773 = vand.u32 %v741, 15
        %v774 = vand.u32 %v742, 15
        %v775 = vand.u32 %v743, 15
        %v776 = vand.u32 %v744, 15
        %v777 = vand.u32 %v745, 15
        %v778 = vand.u32 %v746, 15
        %v779 = vand.u32 %v747, 15
        %v780 = vand.u32 %v748, 15
        %v781 = vand.u32 %v749, 15
        %v782 = vand.u32 %v750, 15
        %v783 = vand.u32 %v751, 15
        %v784 = vand.u32 %v752, 15
        %v785 = vand.u32 %v753, 15
        %v786 = vand.u32 %v754, 15
        %v787 = vand.u32 %v755, 15
        %v788 = vand.u32 %v756, 15
        %v789 = vand.u32 %v757, 15
        %v790 = vand.u32 %v758, 15
        %v791 = vand.u32 %v759, 15
        %v792 = vand.u32 %v760, 15
        %v793 = vand.u32 %v761, 15
        %v794 = vand.u32 %v762, 15
        %v795 = vand.u32 %v763, 15
        %v796 = vand.u32 %v764, 15
        %v797 = vxor.u32 %v765, 8
        %v798 = vxor.u32 %v766, 8
        %v799 = vxor.u32 %v767, 8
        %v800 = vxor.u32 %v768, 8
        %v801 = vxor.u32 %v769, 8
        %v802 = vxor.u32 %v770, 8
        %v803 = vxor.u32 %v771, 8
        %v804 = vxor.u32 %v772, 8
        %v805 = vxor.u32 %v773, 8
        %v806 = vxor.u32 %v774, 8
        %v807 = vxor.u32 %v775, 8
        %v808 = vxor.u32 %v776, 8
        %v809 = vxor.u32 %v777, 8
        %v810 = vxor.u32 %v778, 8
        %v811 = vxor.u32 %v779, 8
        %v812 = vxor.u32 %v780, 8
        %v813 = vxor.u32 %v781, 8
        %v814 = vxor.u32 %v782, 8
        %v815 = vxor.u32 %v783, 8
        %v816 = vxor.u32 %v784, 8
        %v817 = vxor.u32 %v785, 8
        %v818 = vxor.u32 %v786, 8
        %v819 = vxor.u32 %v787, 8
        %v820 = vxor.u32 %v788, 8
        %v821 = vxor.u32 %v789, 8
        %v822 = vxor.u32 %v790, 8
        %v823 = vxor.u32 %v791, 8
        %v824 = vxor.u32 %v792, 8
        %v825 = vxor.u32 %v793, 8
        %v826 = vxor.u32 %v794, 8
        %v827 = vxor.u32 %v795, 8
        %v828 = vxor.u32 %v796, 8
        %v829 = vsub.s32 %v797, 8
        %v830 = vsub.s32 %v798, 8
        %v831 = vsub.s32 %v799, 8
        %v832 = vsub.s32 %v800, 8
        %v833 = vsub.s32 %v801, 8
        %v834 = vsub.s32 %v802, 8
        %v835 = vsub.s32 %v803, 8
        %v836 = vsub.s32 %v804, 8
        %v837 = vsub.s32 %v805, 8
        %v838 = vsub.s32 %v806, 8
        %v839 = vsub.s32 %v807, 8
        %v840 = vsub.s32 %v808, 8
        %v841 = vsub.s32 %v809, 8
        %v842 = vsub.s32 %v810, 8
        %v843 = vsub.s32 %v811, 8
        %v844 = vsub.s32 %v812, 8
        %v845 = vsub.s32 %v813, 8
        %v846 = vsub.s32 %v814, 8
        %v847 = vsub.s32 %v815, 8
        %v848 = vsub.s32 %v816, 8
        %v849 = vsub.s32 %v817, 8
        %v850 = vsub.s32 %v818, 8
        %v851 = vsub.s32 %v819, 8
        %v852 = vsub.s32 %v820, 8
        %v853 = vsub.s32 %v821, 8
        %v854 = vsub.s32 %v822, 8
        %v855 = vsub.s32 %v823, 8
        %v856 = vsub.s32 %v824, 8
        %v857 = vsub.s32 %v825, 8
        %v858 = vsub.s32 %v826, 8
        %v859 = vsub.s32 %v827, 8
        %v860 = vsub.s32 %v828, 8
        %v861 = vshra.s32 %v733, 4
        %v862 = vshra.s32 %v734, 4
        %v863 = vshra.s32 %v735, 4
        %v864 = vshra.s32 %v736, 4
        %v865 = vshra.s32 %v737, 4
        %v866 = vshra.s32 %v738, 4
        %v867 = vshra.s32 %v739, 4
        %v868 = vshra.s32 %v740, 4
        %v869 = vshra.s32 %v741, 4
        %v870 = vshra.s32 %v742, 4
        %v871 = vshra.s32 %v743, 4
        %v872 = vshra.s32 %v744, 4
        %v873 = vshra.s32 %v745, 4
        %v874 = vshra.s32 %v746, 4
        %v875 = vshra.s32 %v747, 4
        %v876 = vshra.s32 %v748, 4
        %v877 = vshra.s32 %v749, 4
        %v878 = vshra.s32 %v750, 4
        %v879 = vshra.s32 %v751, 4
        %v880 = vshra.s32 %v752, 4
        %v881 = vshra.s32 %v753, 4
        %v882 = vshra.s32 %v754, 4
        %v883 = vshra.s32 %v755, 4
        %v884 = vshra.s32 %v756, 4
        %v885 = vshra.s32 %v757, 4
        %v886 = vshra.s32 %v758, 4
        %v887 = vshra.s32 %v759, 4
        %v888 = vshra.s32 %v760, 4
        %v889 = vshra.s32 %v761, 4
        %v890 = vshra.s32 %v762, 4
        %v891 = vshra.s32 %v763, 4
        %v892 = vshra.s32 %v764, 4
        %v893 = vcvt.s32.f32 %v829
        %v894 = vcvt.s32.f32 %v830
        %v895 = vcvt.s32.f32 %v831
        %v896 = vcvt.s32.f32 %v832
        %v897 = vcvt.s32.f32 %v833
        %v898 = vcvt.s32.f32 %v834
        %v899 = vcvt.s32.f32 %v835
        %v900 = vcvt.s32.f32 %v836
        %v901 = vcvt.s32.f32 %v837
        %v902 = vcvt.s32.f32 %v838
        %v903 = vcvt.s32.f32 %v839
        %v904 = vcvt.s32.f32 %v840
        %v905 = vcvt.s32.f32 %v841
        %v906 = vcvt.s32.f32 %v842
        %v907 = vcvt.s32.f32 %v843
        %v908 = vcvt.s32.f32 %v844
        %v909 = vcvt.s32.f32 %v845
        %v910 = vcvt.s32.f32 %v846
        %v911 = vcvt.s32.f32 %v847
        %v912 = vcvt.s32.f32 %v848
        %v913 = vcvt.s32.f32 %v849
        %v914 = vcvt.s32.f32 %v850
        %v915 = vcvt.s32.f32 %v851
        %v916 = vcvt.s32.f32 %v852
        %v917 = vcvt.s32.f32 %v853
        %v918 = vcvt.s32.f32 %v854
        %v919 = vcvt.s32.f32 %v855
        %v920 = vcvt.s32.f32 %v856
        %v921 = vcvt.s32.f32 %v857
        %v922 = vcvt.s32.f32 %v858
        %v923 = vcvt.s32.f32 %v859
        %v924 = vcvt.s32.f32 %v860
        %v925 = vpack.c.bf16 %v895, %v893
        %v926 = vpack.c.bf16 %v896, %v894
        %v927 = vpack.c.bf16 %v899, %v897
        %v928 = vpack.c.bf16 %v900, %v898
        %v929 = vpack.c.bf16 %v903, %v901
        %v930 = vpack.c.bf16 %v904, %v902
        %v931 = vpack.c.bf16 %v907, %v905
        %v932 = vpack.c.bf16 %v908, %v906
        %v933 = vpack.c.bf16 %v911, %v909
        %v934 = vpack.c.bf16 %v912, %v910
        %v935 = vpack.c.bf16 %v915, %v913
        %v936 = vpack.c.bf16 %v916, %v914
        %v937 = vpack.c.bf16 %v919, %v917
        %v938 = vpack.c.bf16 %v920, %v918
        %v939 = vpack.c.bf16 %v923, %v921
        %v940 = vpack.c.bf16 %v924, %v922
        %v941 = vcvt.s32.f32 %v861
        %v942 = vcvt.s32.f32 %v862
        %v943 = vcvt.s32.f32 %v863
        %v944 = vcvt.s32.f32 %v864
        %v945 = vcvt.s32.f32 %v865
        %v946 = vcvt.s32.f32 %v866
        %v947 = vcvt.s32.f32 %v867
        %v948 = vcvt.s32.f32 %v868
        %v949 = vcvt.s32.f32 %v869
        %v950 = vcvt.s32.f32 %v870
        %v951 = vcvt.s32.f32 %v871
        %v952 = vcvt.s32.f32 %v872
        %v953 = vcvt.s32.f32 %v873
        %v954 = vcvt.s32.f32 %v874
        %v955 = vcvt.s32.f32 %v875
        %v956 = vcvt.s32.f32 %v876
        %v957 = vcvt.s32.f32 %v877
        %v958 = vcvt.s32.f32 %v878
        %v959 = vcvt.s32.f32 %v879
        %v960 = vcvt.s32.f32 %v880
        %v961 = vcvt.s32.f32 %v881
        %v962 = vcvt.s32.f32 %v882
        %v963 = vcvt.s32.f32 %v883
        %v964 = vcvt.s32.f32 %v884
        %v965 = vcvt.s32.f32 %v885
        %v966 = vcvt.s32.f32 %v886
        %v967 = vcvt.s32.f32 %v887
        %v968 = vcvt.s32.f32 %v888
        %v969 = vcvt.s32.f32 %v889
        %v970 = vcvt.s32.f32 %v890
        %v971 = vcvt.s32.f32 %v891
        %v972 = vcvt.s32.f32 %v892
        %v973 = vpack.c.bf16 %v943, %v941
        %v974 = vpack.c.bf16 %v944, %v942
        %v975 = vpack.c.bf16 %v947, %v945
        %v976 = vpack.c.bf16 %v948, %v946
        %v977 = vpack.c.bf16 %v951, %v949
        %v978 = vpack.c.bf16 %v952, %v950
        %v979 = vpack.c.bf16 %v955, %v953
        %v980 = vpack.c.bf16 %v956, %v954
        %v981 = vpack.c.bf16 %v959, %v957
        %v982 = vpack.c.bf16 %v960, %v958
        %v983 = vpack.c.bf16 %v963, %v961
        %v984 = vpack.c.bf16 %v964, %v962
        %v985 = vpack.c.bf16 %v967, %v965
        %v986 = vpack.c.bf16 %v968, %v966
        %v987 = vpack.c.bf16 %v971, %v969
        %v988 = vpack.c.bf16 %v972, %v970
        %989 = vmatprep.subr.bf16.mxu0 %v710
        %990 = vmatpush1.bf16.msra.mxu0 %v709
        %991 = vmatprep.subr.bf16.mxu0 %v712
        %992 = vmatpush1.bf16.msra.mxu0 %v711
        %993 = vmatprep.subr.bf16.mxu0 %v714
        %994 = vmatpush1.bf16.msra.mxu0 %v713
        %995 = vmatprep.subr.bf16.mxu0 %v716
        %996 = vmatpush1.bf16.msra.mxu0 %v715
        %997 = vmatprep.subr.bf16.mxu0 %v718
        %998 = vmatpush1.bf16.msra.mxu0 %v717
        %999 = vmatprep.subr.bf16.mxu0 %v720
        %1000 = vmatpush1.bf16.msra.mxu0 %v719
        %1001 = vmatprep.subr.bf16.mxu0 %v722
        %1002 = vmatpush1.bf16.msra.mxu0 %v721
        %1003 = vmatprep.subr.bf16.mxu0 %v724
        %1004 = vmatpush1.bf16.msra.mxu0 %v723
        %1005 = vmatprep.subr.bf16.mxu0 0
        %1006 = vmatpush1.bf16.msra.mxu0 0
        %1007 = vmatprep.subr.bf16.mxu0 0
        %1008 = vmatpush1.bf16.msra.mxu0 0
        %1009 = vmatprep.subr.bf16.mxu0 0
        %1010 = vmatpush1.bf16.msra.mxu0 0
        %1011 = vmatprep.subr.bf16.mxu0 0
        %1012 = vmatpush1.bf16.msra.mxu0 0
        %1013 = vmatprep.subr.bf16.mxu0 0
        %1014 = vmatpush1.bf16.msra.mxu0 0
        %1015 = vmatprep.subr.bf16.mxu0 0
        %1016 = vmatpush1.bf16.msra.mxu0 0
        %1017 = vmatprep.subr.bf16.mxu0 0
        %1018 = vmatpush1.bf16.msra.mxu0 0
        %1019 = vmatprep.subr.bf16.mxu0 0
        %1020 = vmatpush1.bf16.msra.mxu0 0
        %1021 = vmatprep.mubr.bf16.mxu0 0
        %1022 = vmatmul.mubr.bf16.gmra.mrb[0].mxu0 %v458
        %v1023 = vpop.f32.mrb[0].mxu0
        %v1024 = vadd.f32 0.0, %v1023
        %v1025 = vpop.f32.mrb[0].mxu0
        %v1026 = vadd.f32 0.0, %v1025
        %v1027 = vpop.f32.mrb[0].mxu0
        %v1028 = vadd.f32 0.0, %v1027
        %v1029 = vpop.f32.mrb[0].mxu0
        %v1030 = vadd.f32 0.0, %v1029
        %1031 = vmatprep.mubr.bf16.mxu0 0
        %1032 = vmatmul.mubr.bf16.gmra.mrb[0].mxu0 %v460
        %v1033 = vpop.f32.mrb[0].mxu0
        %v1034 = vadd.f32 0.0, %v1033
        %v1035 = vpop.f32.mrb[0].mxu0
        %v1036 = vadd.f32 0.0, %v1035
        %v1037 = vpop.f32.mrb[0].mxu0
        %v1038 = vadd.f32 0.0, %v1037
        %v1039 = vpop.f32.mrb[0].mxu0
        %v1040 = vadd.f32 0.0, %v1039
        %1041 = vdwg.mxu0
        %1042 = vmatprep.subr.bf16.mxu0 %v662
        %1043 = vmatpush1.bf16.msra.mxu0 %v661
        %1044 = vmatprep.subr.bf16.mxu0 %v664
        %1045 = vmatpush1.bf16.msra.mxu0 %v663
        %1046 = vmatprep.subr.bf16.mxu0 %v666
        %1047 = vmatpush1.bf16.msra.mxu0 %v665
        %1048 = vmatprep.subr.bf16.mxu0 %v668
        %1049 = vmatpush1.bf16.msra.mxu0 %v667
        %1050 = vmatprep.subr.bf16.mxu0 %v670
        %1051 = vmatpush1.bf16.msra.mxu0 %v669
        %1052 = vmatprep.subr.bf16.mxu0 %v672
        %1053 = vmatpush1.bf16.msra.mxu0 %v671
        %1054 = vmatprep.subr.bf16.mxu0 %v674
        %1055 = vmatpush1.bf16.msra.mxu0 %v673
        %1056 = vmatprep.subr.bf16.mxu0 %v676
        %1057 = vmatpush1.bf16.msra.mxu0 %v675
        %1058 = vmatprep.subr.bf16.mxu0 0
        %1059 = vmatpush1.bf16.msra.mxu0 0
        %1060 = vmatprep.subr.bf16.mxu0 0
        %1061 = vmatpush1.bf16.msra.mxu0 0
        %1062 = vmatprep.subr.bf16.mxu0 0
        %1063 = vmatpush1.bf16.msra.mxu0 0
        %1064 = vmatprep.subr.bf16.mxu0 0
        %1065 = vmatpush1.bf16.msra.mxu0 0
        %1066 = vmatprep.subr.bf16.mxu0 0
        %1067 = vmatpush1.bf16.msra.mxu0 0
        %1068 = vmatprep.subr.bf16.mxu0 0
        %1069 = vmatpush1.bf16.msra.mxu0 0
        %1070 = vmatprep.subr.bf16.mxu0 0
        %1071 = vmatpush1.bf16.msra.mxu0 0
        %1072 = vmatprep.subr.bf16.mxu0 0
        %1073 = vmatpush1.bf16.msra.mxu0 0
        %1074 = vmatprep.mubr.bf16.mxu0 0
        %1075 = vmatmul.mubr.bf16.gmra.mrb[0].mxu0 %v457
        %v1076 = vpop.f32.mrb[0].mxu0
        %v1077 = vadd.f32 %v1024, %v1076
        %v1078 = vpop.f32.mrb[0].mxu0
        %v1079 = vadd.f32 %v1026, %v1078
        %v1080 = vpop.f32.mrb[0].mxu0
        %v1081 = vadd.f32 %v1028, %v1080
        %v1082 = vpop.f32.mrb[0].mxu0
        %v1083 = vadd.f32 %v1030, %v1082
        %1084 = vmatprep.mubr.bf16.mxu0 0
        %1085 = vmatmul.mubr.bf16.gmra.mrb[0].mxu0 %v459
        %v1086 = vpop.f32.mrb[0].mxu0
        %v1087 = vadd.f32 %v1034, %v1086
        %v1088 = vpop.f32.mrb[0].mxu0
        %v1089 = vadd.f32 %v1036, %v1088
        %v1090 = vpop.f32.mrb[0].mxu0
        %v1091 = vadd.f32 %v1038, %v1090
        %v1092 = vpop.f32.mrb[0].mxu0
        %v1093 = vadd.f32 %v1040, %v1092
        %1094 = vdwg.mxu0
        %v1095 = vmul.f32 %v1077, 0.001
        %v1096 = vmul.f32 %v1079, 0.001
        %v1097 = vmul.f32 %v1081, 0.001
        %v1098 = vmul.f32 %v1083, 0.001
        %v1099 = vmul.f32 %v1087, 0.001
        %v1100 = vmul.f32 %v1089, 0.001
        %v1101 = vmul.f32 %v1091, 0.001
        %v1102 = vmul.f32 %v1093, 0.001
        %v1103 = vld [vmem:[%s432] sm:$0x3]
        %v1105 = vlaneseq
        %v1106 = vshrl.u32 %v1105, 7
        %v1107 = vsub.s32 0, %v1106
        %v1108 = vrot.slane %v1103, %v1107
        %v1109 = vlaneseq
        %v1110 = vshrl.u32 %v1109, 7
        %v1111 = vsub.s32 1, %v1110
        %v1112 = vrot.slane %v1103, %v1111
        %v1115 = vadd.f32 %v1095, %v1108
        %v1116 = vadd.f32 %v1096, %v1112
        %v1117 = vadd.f32 %v1097, %v1108
        %v1118 = vadd.f32 %v1098, %v1112
        %v1119 = vadd.f32 %v1099, %v1108
        %v1120 = vadd.f32 %v1100, %v1112
        %v1121 = vadd.f32 %v1101, %v1108
        %v1122 = vadd.f32 %v1102, %v1112
        %1123 = vmatprep.subr.bf16.mxu0 %v974
        %1124 = vmatpush1.bf16.msra.mxu0 %v973
        %1125 = vmatprep.subr.bf16.mxu0 %v976
        %1126 = vmatpush1.bf16.msra.mxu0 %v975
        %1127 = vmatprep.subr.bf16.mxu0 %v978
        %1128 = vmatpush1.bf16.msra.mxu0 %v977
        %1129 = vmatprep.subr.bf16.mxu0 %v980
        %1130 = vmatpush1.bf16.msra.mxu0 %v979
        %1131 = vmatprep.subr.bf16.mxu0 %v982
        %1132 = vmatpush1.bf16.msra.mxu0 %v981
        %1133 = vmatprep.subr.bf16.mxu0 %v984
        %1134 = vmatpush1.bf16.msra.mxu0 %v983
        %1135 = vmatprep.subr.bf16.mxu0 %v986
        %1136 = vmatpush1.bf16.msra.mxu0 %v985
        %1137 = vmatprep.subr.bf16.mxu0 %v988
        %1138 = vmatpush1.bf16.msra.mxu0 %v987
        %1139 = vmatprep.subr.bf16.mxu0 0
        %1140 = vmatpush1.bf16.msra.mxu0 0
        %1141 = vmatprep.subr.bf16.mxu0 0
        %1142 = vmatpush1.bf16.msra.mxu0 0
        %1143 = vmatprep.subr.bf16.mxu0 0
        %1144 = vmatpush1.bf16.msra.mxu0 0
        %1145 = vmatprep.subr.bf16.mxu0 0
        %1146 = vmatpush1.bf16.msra.mxu0 0
        %1147 = vmatprep.subr.bf16.mxu0 0
        %1148 = vmatpush1.bf16.msra.mxu0 0
        %1149 = vmatprep.subr.bf16.mxu0 0
        %1150 = vmatpush1.bf16.msra.mxu0 0
        %1151 = vmatprep.subr.bf16.mxu0 0
        %1152 = vmatpush1.bf16.msra.mxu0 0
        %1153 = vmatprep.subr.bf16.mxu0 0
        %1154 = vmatpush1.bf16.msra.mxu0 0
        %1155 = vmatprep.mubr.bf16.mxu0 0
        %1156 = vmatmul.mubr.bf16.gmra.mrb[0].mxu0 %v458
        %v1157 = vpop.f32.mrb[0].mxu0
        %v1158 = vadd.f32 0.0, %v1157
        %v1159 = vpop.f32.mrb[0].mxu0
        %v1160 = vadd.f32 0.0, %v1159
        %v1161 = vpop.f32.mrb[0].mxu0
        %v1162 = vadd.f32 0.0, %v1161
        %v1163 = vpop.f32.mrb[0].mxu0
        %v1164 = vadd.f32 0.0, %v1163
        %1165 = vmatprep.mubr.bf16.mxu0 0
        %1166 = vmatmul.mubr.bf16.gmra.mrb[0].mxu0 %v460
        %v1167 = vpop.f32.mrb[0].mxu0
        %v1168 = vadd.f32 0.0, %v1167
        %v1169 = vpop.f32.mrb[0].mxu0
        %v1170 = vadd.f32 0.0, %v1169
        %v1171 = vpop.f32.mrb[0].mxu0
        %v1172 = vadd.f32 0.0, %v1171
        %v1173 = vpop.f32.mrb[0].mxu0
        %v1174 = vadd.f32 0.0, %v1173
        %1175 = vdwg.mxu0
        %1176 = vmatprep.subr.bf16.mxu0 %v926
        %1177 = vmatpush1.bf16.msra.mxu0 %v925
        %1178 = vmatprep.subr.bf16.mxu0 %v928
        %1179 = vmatpush1.bf16.msra.mxu0 %v927
        %1180 = vmatprep.subr.bf16.mxu0 %v930
        %1181 = vmatpush1.bf16.msra.mxu0 %v929
        %1182 = vmatprep.subr.bf16.mxu0 %v932
        %1183 = vmatpush1.bf16.msra.mxu0 %v931
        %1184 = vmatprep.subr.bf16.mxu0 %v934
        %1185 = vmatpush1.bf16.msra.mxu0 %v933
        %1186 = vmatprep.subr.bf16.mxu0 %v936
        %1187 = vmatpush1.bf16.msra.mxu0 %v935
        %1188 = vmatprep.subr.bf16.mxu0 %v938
        %1189 = vmatpush1.bf16.msra.mxu0 %v937
        %1190 = vmatprep.subr.bf16.mxu0 %v940
        %1191 = vmatpush1.bf16.msra.mxu0 %v939
        %1192 = vmatprep.subr.bf16.mxu0 0
        %1193 = vmatpush1.bf16.msra.mxu0 0
        %1194 = vmatprep.subr.bf16.mxu0 0
        %1195 = vmatpush1.bf16.msra.mxu0 0
        %1196 = vmatprep.subr.bf16.mxu0 0
        %1197 = vmatpush1.bf16.msra.mxu0 0
        %1198 = vmatprep.subr.bf16.mxu0 0
        %1199 = vmatpush1.bf16.msra.mxu0 0
        %1200 = vmatprep.subr.bf16.mxu0 0
        %1201 = vmatpush1.bf16.msra.mxu0 0
        %1202 = vmatprep.subr.bf16.mxu0 0
        %1203 = vmatpush1.bf16.msra.mxu0 0
        %1204 = vmatprep.subr.bf16.mxu0 0
        %1205 = vmatpush1.bf16.msra.mxu0 0
        %1206 = vmatprep.subr.bf16.mxu0 0
        %1207 = vmatpush1.bf16.msra.mxu0 0
        %1208 = vmatprep.mubr.bf16.mxu0 0
        %1209 = vmatmul.mubr.bf16.gmra.mrb[0].mxu0 %v457
        %v1210 = vpop.f32.mrb[0].mxu0
        %v1211 = vadd.f32 %v1158, %v1210
        %v1212 = vpop.f32.mrb[0].mxu0
        %v1213 = vadd.f32 %v1160, %v1212
        %v1214 = vpop.f32.mrb[0].mxu0
        %v1215 = vadd.f32 %v1162, %v1214
        %v1216 = vpop.f32.mrb[0].mxu0
        %v1217 = vadd.f32 %v1164, %v1216
        %1218 = vmatprep.mubr.bf16.mxu0 0
        %1219 = vmatmul.mubr.bf16.gmra.mrb[0].mxu0 %v459
        %v1220 = vpop.f32.mrb[0].mxu0
        %v1221 = vadd.f32 %v1168, %v1220
        %v1222 = vpop.f32.mrb[0].mxu0
        %v1223 = vadd.f32 %v1170, %v1222
        %v1224 = vpop.f32.mrb[0].mxu0
        %v1225 = vadd.f32 %v1172, %v1224
        %v1226 = vpop.f32.mrb[0].mxu0
        %v1227 = vadd.f32 %v1174, %v1226
        %1228 = vdwg.mxu0
        %v1229 = vmul.f32 %v1211, 0.001
        %v1230 = vmul.f32 %v1213, 0.001
        %v1231 = vmul.f32 %v1215, 0.001
        %v1232 = vmul.f32 %v1217, 0.001
        %v1233 = vmul.f32 %v1221, 0.001
        %v1234 = vmul.f32 %v1223, 0.001
        %v1235 = vmul.f32 %v1225, 0.001
        %v1236 = vmul.f32 %v1227, 0.001
        %v1237 = vld [vmem:[%s438] sm:$0x3]
        %v1239 = vlaneseq
        %v1240 = vshrl.u32 %v1239, 7
        %v1241 = vsub.s32 0, %v1240
        %v1242 = vrot.slane %v1237, %v1241
        %v1243 = vlaneseq
        %v1244 = vshrl.u32 %v1243, 7
        %v1245 = vsub.s32 1, %v1244
        %v1246 = vrot.slane %v1237, %v1245
        %v1249 = vadd.f32 %v1229, %v1242
        %v1250 = vadd.f32 %v1230, %v1246
        %v1251 = vadd.f32 %v1231, %v1242
        %v1252 = vadd.f32 %v1232, %v1246
        %v1253 = vadd.f32 %v1233, %v1242
        %v1254 = vadd.f32 %v1234, %v1246
        %v1255 = vadd.f32 %v1235, %v1242
        %v1256 = vadd.f32 %v1236, %v1246
        %v1257 = vxor.u32 %v1115, 2147483648
        %v1258 = vxor.u32 %v1116, 2147483648
        %v1259 = vxor.u32 %v1117, 2147483648
        %v1260 = vxor.u32 %v1118, 2147483648
        %v1261 = vxor.u32 %v1119, 2147483648
        %v1262 = vxor.u32 %v1120, 2147483648
        %v1263 = vxor.u32 %v1121, 2147483648
        %v1264 = vxor.u32 %v1122, 2147483648
        %v1265 = vmul.f32 %v1257, 1.442695
        %v1266 = vpow.pop %v1265
        %v1267 = vmul.f32 %v1258, 1.442695
        %v1268 = vpow.pop %v1267
        %v1269 = vmul.f32 %v1259, 1.442695
        %v1270 = vpow.pop %v1269
        %v1271 = vmul.f32 %v1260, 1.442695
        %v1272 = vpow.pop %v1271
        %v1273 = vmul.f32 %v1261, 1.442695
        %v1274 = vpow.pop %v1273
        %v1275 = vmul.f32 %v1262, 1.442695
        %v1276 = vpow.pop %v1275
        %v1277 = vmul.f32 %v1263, 1.442695
        %v1278 = vpow.pop %v1277
        %v1279 = vmul.f32 %v1264, 1.442695
        %v1280 = vpow.pop %v1279
        %v1281 = vadd.f32 %v1266, 1.0
        %v1282 = vadd.f32 %v1268, 1.0
        %v1283 = vadd.f32 %v1270, 1.0
        %v1284 = vadd.f32 %v1272, 1.0
        %v1285 = vadd.f32 %v1274, 1.0
        %v1286 = vadd.f32 %v1276, 1.0
        %v1287 = vadd.f32 %v1278, 1.0
        %v1288 = vadd.f32 %v1280, 1.0
        %v1289 = vrcp.pop %v1281
        %v1290 = vmul.f32 1.0, %v1289
        %v1291 = vrcp.pop %v1282
        %v1292 = vmul.f32 1.0, %v1291
        %v1293 = vrcp.pop %v1283
        %v1294 = vmul.f32 1.0, %v1293
        %v1295 = vrcp.pop %v1284
        %v1296 = vmul.f32 1.0, %v1295
        %v1297 = vrcp.pop %v1285
        %v1298 = vmul.f32 1.0, %v1297
        %v1299 = vrcp.pop %v1286
        %v1300 = vmul.f32 1.0, %v1299
        %v1301 = vrcp.pop %v1287
        %v1302 = vmul.f32 1.0, %v1301
        %v1303 = vrcp.pop %v1288
        %v1304 = vmul.f32 1.0, %v1303
        %v1305 = vmul.f32 %v1115, %v1290
        %v1306 = vmul.f32 %v1116, %v1292
        %v1307 = vmul.f32 %v1117, %v1294
        %v1308 = vmul.f32 %v1118, %v1296
        %v1309 = vmul.f32 %v1119, %v1298
        %v1310 = vmul.f32 %v1120, %v1300
        %v1311 = vmul.f32 %v1121, %v1302
        %v1312 = vmul.f32 %v1122, %v1304
        %v1313 = vmul.f32 %v1305, %v1249
        %v1314 = vmul.f32 %v1306, %v1250
        %v1315 = vmul.f32 %v1307, %v1251
        %v1316 = vmul.f32 %v1308, %v1252
        %v1317 = vmul.f32 %v1309, %v1253
        %v1318 = vmul.f32 %v1310, %v1254
        %v1319 = vmul.f32 %v1311, %v1255
        %v1320 = vmul.f32 %v1312, %v1256
        %v1321 = vmul.f32 %v1313, 10.0
        %v1322 = vmul.f32 %v1314, 10.0
        %v1323 = vmul.f32 %v1315, 10.0
        %v1324 = vmul.f32 %v1316, 10.0
        %v1325 = vmul.f32 %v1317, 10.0
        %v1326 = vmul.f32 %v1318, 10.0
        %v1327 = vmul.f32 %v1319, 10.0
        %v1328 = vmul.f32 %v1320, 10.0
        %v1329 = vround.ne.pseudo %v1321
        %v1330 = vround.ne.pseudo %v1322
        %v1331 = vround.ne.pseudo %v1323
        %v1332 = vround.ne.pseudo %v1324
        %v1333 = vround.ne.pseudo %v1325
        %v1334 = vround.ne.pseudo %v1326
        %v1335 = vround.ne.pseudo %v1327
        %v1336 = vround.ne.pseudo %v1328
        %v1337 = vmax.f32 %v1329, -128.0
        %v1338 = vmax.f32 %v1330, -128.0
        %v1339 = vmax.f32 %v1331, -128.0
        %v1340 = vmax.f32 %v1332, -128.0
        %v1341 = vmax.f32 %v1333, -128.0
        %v1342 = vmax.f32 %v1334, -128.0
        %v1343 = vmax.f32 %v1335, -128.0
        %v1344 = vmax.f32 %v1336, -128.0
        %v1345 = vmin.f32 %v1337, 127.0
        %v1346 = vmin.f32 %v1338, 127.0
        %v1347 = vmin.f32 %v1339, 127.0
        %v1348 = vmin.f32 %v1340, 127.0
        %v1349 = vmin.f32 %v1341, 127.0
        %v1350 = vmin.f32 %v1342, 127.0
        %v1351 = vmin.f32 %v1343, 127.0
        %v1352 = vmin.f32 %v1344, 127.0
        %v1353 = vpack.c.bf16 %v1347, %v1345
        %v1354 = vpack.c.bf16 %v1348, %v1346
        %v1355 = vpack.c.bf16 %v1351, %v1349
        %v1356 = vpack.c.bf16 %v1352, %v1350
        %v1357 = vld [vmem:[%s384] sm:$0xff]
        %v1358 = vld [vmem:[%s384 + $0x8] sm:$0xff]
        %v1359 = vld [vmem:[%s384 + $0x10] sm:$0xff]
        %v1360 = vld [vmem:[%s384 + $0x18] sm:$0xff]
        %v1361 = vld [vmem:[%s384 + $0x20] sm:$0xff]
        %v1362 = vld [vmem:[%s384 + $0x28] sm:$0xff]
        %v1363 = vld [vmem:[%s384 + $0x30] sm:$0xff]
        %v1364 = vld [vmem:[%s384 + $0x38] sm:$0xff]
        %v1365 = vunpack.c.0.s8 %v1357
        %v1366 = vunpack.c.1.s8 %v1357
        %v1367 = vunpack.c.2.s8 %v1357
        %v1368 = vunpack.c.3.s8 %v1357
        %v1369 = vunpack.c.0.s8 %v1358
        %v1370 = vunpack.c.1.s8 %v1358
        %v1371 = vunpack.c.2.s8 %v1358
        %v1372 = vunpack.c.3.s8 %v1358
        %v1373 = vunpack.c.0.s8 %v1359
        %v1374 = vunpack.c.1.s8 %v1359
        %v1375 = vunpack.c.2.s8 %v1359
        %v1376 = vunpack.c.3.s8 %v1359
        %v1377 = vunpack.c.0.s8 %v1360
        %v1378 = vunpack.c.1.s8 %v1360
        %v1379 = vunpack.c.2.s8 %v1360
        %v1380 = vunpack.c.3.s8 %v1360
        %v1381 = vunpack.c.0.s8 %v1361
        %v1382 = vunpack.c.1.s8 %v1361
        %v1383 = vunpack.c.2.s8 %v1361
        %v1384 = vunpack.c.3.s8 %v1361
        %v1385 = vunpack.c.0.s8 %v1362
        %v1386 = vunpack.c.1.s8 %v1362
        %v1387 = vunpack.c.2.s8 %v1362
        %v1388 = vunpack.c.3.s8 %v1362
        %v1389 = vunpack.c.0.s8 %v1363
        %v1390 = vunpack.c.1.s8 %v1363
        %v1391 = vunpack.c.2.s8 %v1363
        %v1392 = vunpack.c.3.s8 %v1363
        %v1393 = vunpack.c.0.s8 %v1364
        %v1394 = vunpack.c.1.s8 %v1364
        %v1395 = vunpack.c.2.s8 %v1364
        %v1396 = vunpack.c.3.s8 %v1364
        %v1397 = vand.u32 %v1365, 15
        %v1398 = vand.u32 %v1366, 15
        %v1399 = vand.u32 %v1367, 15
        %v1400 = vand.u32 %v1368, 15
        %v1401 = vand.u32 %v1369, 15
        %v1402 = vand.u32 %v1370, 15
        %v1403 = vand.u32 %v1371, 15
        %v1404 = vand.u32 %v1372, 15
        %v1405 = vand.u32 %v1373, 15
        %v1406 = vand.u32 %v1374, 15
        %v1407 = vand.u32 %v1375, 15
        %v1408 = vand.u32 %v1376, 15
        %v1409 = vand.u32 %v1377, 15
        %v1410 = vand.u32 %v1378, 15
        %v1411 = vand.u32 %v1379, 15
        %v1412 = vand.u32 %v1380, 15
        %v1413 = vand.u32 %v1381, 15
        %v1414 = vand.u32 %v1382, 15
        %v1415 = vand.u32 %v1383, 15
        %v1416 = vand.u32 %v1384, 15
        %v1417 = vand.u32 %v1385, 15
        %v1418 = vand.u32 %v1386, 15
        %v1419 = vand.u32 %v1387, 15
        %v1420 = vand.u32 %v1388, 15
        %v1421 = vand.u32 %v1389, 15
        %v1422 = vand.u32 %v1390, 15
        %v1423 = vand.u32 %v1391, 15
        %v1424 = vand.u32 %v1392, 15
        %v1425 = vand.u32 %v1393, 15
        %v1426 = vand.u32 %v1394, 15
        %v1427 = vand.u32 %v1395, 15
        %v1428 = vand.u32 %v1396, 15
        %v1429 = vxor.u32 %v1397, 8
        %v1430 = vxor.u32 %v1398, 8
        %v1431 = vxor.u32 %v1399, 8
        %v1432 = vxor.u32 %v1400, 8
        %v1433 = vxor.u32 %v1401, 8
        %v1434 = vxor.u32 %v1402, 8
        %v1435 = vxor.u32 %v1403, 8
        %v1436 = vxor.u32 %v1404, 8
        %v1437 = vxor.u32 %v1405, 8
        %v1438 = vxor.u32 %v1406, 8
        %v1439 = vxor.u32 %v1407, 8
        %v1440 = vxor.u32 %v1408, 8
        %v1441 = vxor.u32 %v1409, 8
        %v1442 = vxor.u32 %v1410, 8
        %v1443 = vxor.u32 %v1411, 8
        %v1444 = vxor.u32 %v1412, 8
        %v1445 = vxor.u32 %v1413, 8
        %v1446 = vxor.u32 %v1414, 8
        %v1447 = vxor.u32 %v1415, 8
        %v1448 = vxor.u32 %v1416, 8
        %v1449 = vxor.u32 %v1417, 8
        %v1450 = vxor.u32 %v1418, 8
        %v1451 = vxor.u32 %v1419, 8
        %v1452 = vxor.u32 %v1420, 8
        %v1453 = vxor.u32 %v1421, 8
        %v1454 = vxor.u32 %v1422, 8
        %v1455 = vxor.u32 %v1423, 8
        %v1456 = vxor.u32 %v1424, 8
        %v1457 = vxor.u32 %v1425, 8
        %v1458 = vxor.u32 %v1426, 8
        %v1459 = vxor.u32 %v1427, 8
        %v1460 = vxor.u32 %v1428, 8
        %v1461 = vsub.s32 %v1429, 8
        %v1462 = vsub.s32 %v1430, 8
        %v1463 = vsub.s32 %v1431, 8
        %v1464 = vsub.s32 %v1432, 8
        %v1465 = vsub.s32 %v1433, 8
        %v1466 = vsub.s32 %v1434, 8
        %v1467 = vsub.s32 %v1435, 8
        %v1468 = vsub.s32 %v1436, 8
        %v1469 = vsub.s32 %v1437, 8
        %v1470 = vsub.s32 %v1438, 8
        %v1471 = vsub.s32 %v1439, 8
        %v1472 = vsub.s32 %v1440, 8
        %v1473 = vsub.s32 %v1441, 8
        %v1474 = vsub.s32 %v1442, 8
        %v1475 = vsub.s32 %v1443, 8
        %v1476 = vsub.s32 %v1444, 8
        %v1477 = vsub.s32 %v1445, 8
        %v1478 = vsub.s32 %v1446, 8
        %v1479 = vsub.s32 %v1447, 8
        %v1480 = vsub.s32 %v1448, 8
        %v1481 = vsub.s32 %v1449, 8
        %v1482 = vsub.s32 %v1450, 8
        %v1483 = vsub.s32 %v1451, 8
        %v1484 = vsub.s32 %v1452, 8
        %v1485 = vsub.s32 %v1453, 8
        %v1486 = vsub.s32 %v1454, 8
        %v1487 = vsub.s32 %v1455, 8
        %v1488 = vsub.s32 %v1456, 8
        %v1489 = vsub.s32 %v1457, 8
        %v1490 = vsub.s32 %v1458, 8
        %v1491 = vsub.s32 %v1459, 8
        %v1492 = vsub.s32 %v1460, 8
        %v1493 = vshra.s32 %v1365, 4
        %v1494 = vshra.s32 %v1366, 4
        %v1495 = vshra.s32 %v1367, 4
        %v1496 = vshra.s32 %v1368, 4
        %v1497 = vshra.s32 %v1369, 4
        %v1498 = vshra.s32 %v1370, 4
        %v1499 = vshra.s32 %v1371, 4
        %v1500 = vshra.s32 %v1372, 4
        %v1501 = vshra.s32 %v1373, 4
        %v1502 = vshra.s32 %v1374, 4
        %v1503 = vshra.s32 %v1375, 4
        %v1504 = vshra.s32 %v1376, 4
        %v1505 = vshra.s32 %v1377, 4
        %v1506 = vshra.s32 %v1378, 4
        %v1507 = vshra.s32 %v1379, 4
        %v1508 = vshra.s32 %v1380, 4
        %v1509 = vshra.s32 %v1381, 4
        %v1510 = vshra.s32 %v1382, 4
        %v1511 = vshra.s32 %v1383, 4
        %v1512 = vshra.s32 %v1384, 4
        %v1513 = vshra.s32 %v1385, 4
        %v1514 = vshra.s32 %v1386, 4
        %v1515 = vshra.s32 %v1387, 4
        %v1516 = vshra.s32 %v1388, 4
        %v1517 = vshra.s32 %v1389, 4
        %v1518 = vshra.s32 %v1390, 4
        %v1519 = vshra.s32 %v1391, 4
        %v1520 = vshra.s32 %v1392, 4
        %v1521 = vshra.s32 %v1393, 4
        %v1522 = vshra.s32 %v1394, 4
        %v1523 = vshra.s32 %v1395, 4
        %v1524 = vshra.s32 %v1396, 4
        %v1525 = vcvt.s32.f32 %v1461
        %v1526 = vcvt.s32.f32 %v1462
        %v1527 = vcvt.s32.f32 %v1463
        %v1528 = vcvt.s32.f32 %v1464
        %v1529 = vcvt.s32.f32 %v1465
        %v1530 = vcvt.s32.f32 %v1466
        %v1531 = vcvt.s32.f32 %v1467
        %v1532 = vcvt.s32.f32 %v1468
        %v1533 = vcvt.s32.f32 %v1469
        %v1534 = vcvt.s32.f32 %v1470
        %v1535 = vcvt.s32.f32 %v1471
        %v1536 = vcvt.s32.f32 %v1472
        %v1537 = vcvt.s32.f32 %v1473
        %v1538 = vcvt.s32.f32 %v1474
        %v1539 = vcvt.s32.f32 %v1475
        %v1540 = vcvt.s32.f32 %v1476
        %v1541 = vcvt.s32.f32 %v1477
        %v1542 = vcvt.s32.f32 %v1478
        %v1543 = vcvt.s32.f32 %v1479
        %v1544 = vcvt.s32.f32 %v1480
        %v1545 = vcvt.s32.f32 %v1481
        %v1546 = vcvt.s32.f32 %v1482
        %v1547 = vcvt.s32.f32 %v1483
        %v1548 = vcvt.s32.f32 %v1484
        %v1549 = vcvt.s32.f32 %v1485
        %v1550 = vcvt.s32.f32 %v1486
        %v1551 = vcvt.s32.f32 %v1487
        %v1552 = vcvt.s32.f32 %v1488
        %v1553 = vcvt.s32.f32 %v1489
        %v1554 = vcvt.s32.f32 %v1490
        %v1555 = vcvt.s32.f32 %v1491
        %v1556 = vcvt.s32.f32 %v1492
        %v1557 = vpack.c.bf16 %v1526, %v1525
        %v1558 = vpack.c.bf16 %v1528, %v1527
        %v1559 = vpack.c.bf16 %v1530, %v1529
        %v1560 = vpack.c.bf16 %v1532, %v1531
        %v1561 = vpack.c.bf16 %v1534, %v1533
        %v1562 = vpack.c.bf16 %v1536, %v1535
        %v1563 = vpack.c.bf16 %v1538, %v1537
        %v1564 = vpack.c.bf16 %v1540, %v1539
        %v1565 = vpack.c.bf16 %v1542, %v1541
        %v1566 = vpack.c.bf16 %v1544, %v1543
        %v1567 = vpack.c.bf16 %v1546, %v1545
        %v1568 = vpack.c.bf16 %v1548, %v1547
        %v1569 = vpack.c.bf16 %v1550, %v1549
        %v1570 = vpack.c.bf16 %v1552, %v1551
        %v1571 = vpack.c.bf16 %v1554, %v1553
        %v1572 = vpack.c.bf16 %v1556, %v1555
        %v1573 = vcvt.s32.f32 %v1493
        %v1574 = vcvt.s32.f32 %v1494
        %v1575 = vcvt.s32.f32 %v1495
        %v1576 = vcvt.s32.f32 %v1496
        %v1577 = vcvt.s32.f32 %v1497
        %v1578 = vcvt.s32.f32 %v1498
        %v1579 = vcvt.s32.f32 %v1499
        %v1580 = vcvt.s32.f32 %v1500
        %v1581 = vcvt.s32.f32 %v1501
        %v1582 = vcvt.s32.f32 %v1502
        %v1583 = vcvt.s32.f32 %v1503
        %v1584 = vcvt.s32.f32 %v1504
        %v1585 = vcvt.s32.f32 %v1505
        %v1586 = vcvt.s32.f32 %v1506
        %v1587 = vcvt.s32.f32 %v1507
        %v1588 = vcvt.s32.f32 %v1508
        %v1589 = vcvt.s32.f32 %v1509
        %v1590 = vcvt.s32.f32 %v1510
        %v1591 = vcvt.s32.f32 %v1511
        %v1592 = vcvt.s32.f32 %v1512
        %v1593 = vcvt.s32.f32 %v1513
        %v1594 = vcvt.s32.f32 %v1514
        %v1595 = vcvt.s32.f32 %v1515
        %v1596 = vcvt.s32.f32 %v1516
        %v1597 = vcvt.s32.f32 %v1517
        %v1598 = vcvt.s32.f32 %v1518
        %v1599 = vcvt.s32.f32 %v1519
        %v1600 = vcvt.s32.f32 %v1520
        %v1601 = vcvt.s32.f32 %v1521
        %v1602 = vcvt.s32.f32 %v1522
        %v1603 = vcvt.s32.f32 %v1523
        %v1604 = vcvt.s32.f32 %v1524
        %v1605 = vpack.c.bf16 %v1574, %v1573
        %v1606 = vpack.c.bf16 %v1576, %v1575
        %v1607 = vpack.c.bf16 %v1578, %v1577
        %v1608 = vpack.c.bf16 %v1580, %v1579
        %v1609 = vpack.c.bf16 %v1582, %v1581
        %v1610 = vpack.c.bf16 %v1584, %v1583
        %v1611 = vpack.c.bf16 %v1586, %v1585
        %v1612 = vpack.c.bf16 %v1588, %v1587
        %v1613 = vpack.c.bf16 %v1590, %v1589
        %v1614 = vpack.c.bf16 %v1592, %v1591
        %v1615 = vpack.c.bf16 %v1594, %v1593
        %v1616 = vpack.c.bf16 %v1596, %v1595
        %v1617 = vpack.c.bf16 %v1598, %v1597
        %v1618 = vpack.c.bf16 %v1600, %v1599
        %v1619 = vpack.c.bf16 %v1602, %v1601
        %v1620 = vpack.c.bf16 %v1604, %v1603
        %1621 = vmatprep.subr.bf16.mxu0 0
        %1622 = vmatpush1.bf16.msra.mxu0 %v1557
        %1623 = vmatprep.subr.bf16.mxu0 0
        %1624 = vmatpush1.bf16.msra.mxu0 %v1558
        %1625 = vmatprep.subr.bf16.mxu0 0
        %1626 = vmatpush1.bf16.msra.mxu0 %v1559
        %1627 = vmatprep.subr.bf16.mxu0 0
        %1628 = vmatpush1.bf16.msra.mxu0 %v1560
        %1629 = vmatprep.subr.bf16.mxu0 0
        %1630 = vmatpush1.bf16.msra.mxu0 %v1561
        %1631 = vmatprep.subr.bf16.mxu0 0
        %1632 = vmatpush1.bf16.msra.mxu0 %v1562
        %1633 = vmatprep.subr.bf16.mxu0 0
        %1634 = vmatpush1.bf16.msra.mxu0 %v1563
        %1635 = vmatprep.subr.bf16.mxu0 0
        %1636 = vmatpush1.bf16.msra.mxu0 %v1564
        %1637 = vmatprep.subr.bf16.mxu0 0
        %1638 = vmatpush1.bf16.msra.mxu0 %v1565
        %1639 = vmatprep.subr.bf16.mxu0 0
        %1640 = vmatpush1.bf16.msra.mxu0 %v1566
        %1641 = vmatprep.subr.bf16.mxu0 0
        %1642 = vmatpush1.bf16.msra.mxu0 %v1567
        %1643 = vmatprep.subr.bf16.mxu0 0
        %1644 = vmatpush1.bf16.msra.mxu0 %v1568
        %1645 = vmatprep.subr.bf16.mxu0 0
        %1646 = vmatpush1.bf16.msra.mxu0 %v1569
        %1647 = vmatprep.subr.bf16.mxu0 0
        %1648 = vmatpush1.bf16.msra.mxu0 %v1570
        %1649 = vmatprep.subr.bf16.mxu0 0
        %1650 = vmatpush1.bf16.msra.mxu0 %v1571
        %1651 = vmatprep.subr.bf16.mxu0 0
        %1652 = vmatpush1.bf16.msra.mxu0 %v1572
        %1653 = vmatprep.mubr.bf16.mxu0 %v1354
        %1654 = vmatmul.mubr.bf16.gmra.mrb[0].mxu0 %v1353
        %v1655 = vpop.f32.mrb[0].mxu0
        %v1656 = vadd.f32 0.0, %v1655
        %v1657 = vpop.f32.mrb[0].mxu0
        %v1658 = vpop.f32.mrb[0].mxu0
        %v1659 = vadd.f32 0.0, %v1658
        %v1660 = vpop.f32.mrb[0].mxu0
        %1661 = vmatprep.mubr.bf16.mxu0 %v1356
        %1662 = vmatmul.mubr.bf16.gmra.mrb[0].mxu0 %v1355
        %v1663 = vpop.f32.mrb[0].mxu0
        %v1664 = vadd.f32 0.0, %v1663
        %v1665 = vpop.f32.mrb[0].mxu0
        %v1666 = vpop.f32.mrb[0].mxu0
        %v1667 = vadd.f32 0.0, %v1666
        %v1668 = vpop.f32.mrb[0].mxu0
        %1669 = vdwg.mxu0
        %1670 = vmatprep.subr.bf16.mxu0 0
        %1671 = vmatpush1.bf16.msra.mxu0 %v1605
        %1672 = vmatprep.subr.bf16.mxu0 0
        %1673 = vmatpush1.bf16.msra.mxu0 %v1606
        %1674 = vmatprep.subr.bf16.mxu0 0
        %1675 = vmatpush1.bf16.msra.mxu0 %v1607
        %1676 = vmatprep.subr.bf16.mxu0 0
        %1677 = vmatpush1.bf16.msra.mxu0 %v1608
        %1678 = vmatprep.subr.bf16.mxu0 0
        %1679 = vmatpush1.bf16.msra.mxu0 %v1609
        %1680 = vmatprep.subr.bf16.mxu0 0
        %1681 = vmatpush1.bf16.msra.mxu0 %v1610
        %1682 = vmatprep.subr.bf16.mxu0 0
        %1683 = vmatpush1.bf16.msra.mxu0 %v1611
        %1684 = vmatprep.subr.bf16.mxu0 0
        %1685 = vmatpush1.bf16.msra.mxu0 %v1612
        %1686 = vmatprep.subr.bf16.mxu0 0
        %1687 = vmatpush1.bf16.msra.mxu0 %v1613
        %1688 = vmatprep.subr.bf16.mxu0 0
        %1689 = vmatpush1.bf16.msra.mxu0 %v1614
        %1690 = vmatprep.subr.bf16.mxu0 0
        %1691 = vmatpush1.bf16.msra.mxu0 %v1615
        %1692 = vmatprep.subr.bf16.mxu0 0
        %1693 = vmatpush1.bf16.msra.mxu0 %v1616
        %1694 = vmatprep.subr.bf16.mxu0 0
        %1695 = vmatpush1.bf16.msra.mxu0 %v1617
        %1696 = vmatprep.subr.bf16.mxu0 0
        %1697 = vmatpush1.bf16.msra.mxu0 %v1618
        %1698 = vmatprep.subr.bf16.mxu0 0
        %1699 = vmatpush1.bf16.msra.mxu0 %v1619
        %1700 = vmatprep.subr.bf16.mxu0 0
        %1701 = vmatpush1.bf16.msra.mxu0 %v1620
        %1702 = vmatprep.mubr.bf16.mxu0 %v1354
        %1703 = vmatmul.mubr.bf16.gmra.mrb[0].mxu0 %v1353
        %v1704 = vpop.f32.mrb[0].mxu0
        %v1705 = vadd.f32 0.0, %v1704
        %v1706 = vpop.f32.mrb[0].mxu0
        %v1707 = vpop.f32.mrb[0].mxu0
        %v1708 = vadd.f32 0.0, %v1707
        %v1709 = vpop.f32.mrb[0].mxu0
        %1710 = vmatprep.mubr.bf16.mxu0 %v1356
        %1711 = vmatmul.mubr.bf16.gmra.mrb[0].mxu0 %v1355
        %v1712 = vpop.f32.mrb[0].mxu0
        %v1713 = vadd.f32 0.0, %v1712
        %v1714 = vpop.f32.mrb[0].mxu0
        %v1715 = vpop.f32.mrb[0].mxu0
        %v1716 = vadd.f32 0.0, %v1715
        %v1717 = vpop.f32.mrb[0].mxu0
        %1718 = vdwg.mxu0
        // Predicated region
        $region69: #{tpu_custom_call.1} parent=47 // pred_check
          %p1719 = pneg %p443
        $region70: #{tpu_custom_call.1} parent=47 // pred_check_branch
          %1721 = sbr.rel (%p1719) target = $region72
        $region71: #{tpu_custom_call.1} parent=47 // pred_region
          %1722 = vst [vmem:[#allocation11] sm:$0xff] %v1656
          %1723 = vst [vmem:[#allocation11 + $0x8] sm:$0xff] %v1705
          %1724 = vst [vmem:[#allocation11 + $0x10] sm:$0xff] %v1659
          %1725 = vst [vmem:[#allocation11 + $0x18] sm:$0xff] %v1708
          %1726 = vst [vmem:[#allocation11 + $0x20] sm:$0xff] %v1664
          %1727 = vst [vmem:[#allocation11 + $0x28] sm:$0xff] %v1713
          %1728 = vst [vmem:[#allocation11 + $0x30] sm:$0xff] %v1667
          %1729 = vst [vmem:[#allocation11 + $0x38] sm:$0xff] %v1716
        $region72: #{tpu_custom_call.1} parent=47 // pred_fallthru
          _
        %p1730 = scmp.gt.s32.totalorder %s31, 0
        // Predicated region
        $region73: #{tpu_custom_call.1} parent=47 // pred_check
          %p1731 = pneg %p1730
        $region74: #{tpu_custom_call.1} parent=47 // pred_check_branch
          %1733 = sbr.rel (%p1731) target = $region76
        $region75: #{tpu_custom_call.1} parent=47 // pred_region
          %v1734 = vld [vmem:[#allocation11] sm:$0xff]
          %v1735 = vld [vmem:[#allocation11 + $0x8] sm:$0xff]
          %v1736 = vld [vmem:[#allocation11 + $0x10] sm:$0xff]
          %v1737 = vld [vmem:[#allocation11 + $0x18] sm:$0xff]
          %v1738 = vld [vmem:[#allocation11 + $0x20] sm:$0xff]
          %v1739 = vld [vmem:[#allocation11 + $0x28] sm:$0xff]
          %v1740 = vld [vmem:[#allocation11 + $0x30] sm:$0xff]
          %v1741 = vld [vmem:[#allocation11 + $0x38] sm:$0xff]
          %v1742 = vadd.f32 %v1734, %v1656
          %v1743 = vadd.f32 %v1735, %v1705
          %v1744 = vadd.f32 %v1736, %v1659
          %v1745 = vadd.f32 %v1737, %v1708
          %v1746 = vadd.f32 %v1738, %v1664
          %v1747 = vadd.f32 %v1739, %v1713
          %v1748 = vadd.f32 %v1740, %v1667
          %v1749 = vadd.f32 %v1741, %v1716
          %1750 = vst [vmem:[#allocation11] sm:$0xff] %v1742
          %1751 = vst [vmem:[#allocation11 + $0x8] sm:$0xff] %v1743
          %1752 = vst [vmem:[#allocation11 + $0x10] sm:$0xff] %v1744
          %1753 = vst [vmem:[#allocation11 + $0x18] sm:$0xff] %v1745
          %1754 = vst [vmem:[#allocation11 + $0x20] sm:$0xff] %v1746
          %1755 = vst [vmem:[#allocation11 + $0x28] sm:$0xff] %v1747
          %1756 = vst [vmem:[#allocation11 + $0x30] sm:$0xff] %v1748
          %1757 = vst [vmem:[#allocation11 + $0x38] sm:$0xff] %v1749
        $region76: #{tpu_custom_call.1} parent=47 // pred_fallthru
          _
        %p1758 = scmp.eq.s32.totalorder %s31, 1
        // Predicated region
        $region77: #{tpu_custom_call.1} parent=47 // pred_check
          %p1759 = pneg %p1758
        $region78: #{tpu_custom_call.1} parent=47 // pred_check_branch
          %1761 = sbr.rel (%p1759) target = $region80
        $region79: #{tpu_custom_call.1} parent=47 // pred_region
          %v1762 = vld [vmem:[#allocation11] sm:$0xff]
          %v1763 = vld [vmem:[#allocation11 + $0x8] sm:$0xff]
          %v1764 = vld [vmem:[#allocation11 + $0x10] sm:$0xff]
          %v1765 = vld [vmem:[#allocation11 + $0x18] sm:$0xff]
          %v1766 = vld [vmem:[#allocation11 + $0x20] sm:$0xff]
          %v1767 = vld [vmem:[#allocation11 + $0x28] sm:$0xff]
          %v1768 = vld [vmem:[#allocation11 + $0x30] sm:$0xff]
          %v1769 = vld [vmem:[#allocation11 + $0x38] sm:$0xff]
          %v1770 = vmul.f32 %v1762, 0.002
          %v1771 = vmul.f32 %v1763, 0.002
          %v1772 = vmul.f32 %v1764, 0.002
          %v1773 = vmul.f32 %v1765, 0.002
          %v1774 = vmul.f32 %v1766, 0.002
          %v1775 = vmul.f32 %v1767, 0.002
          %v1776 = vmul.f32 %v1768, 0.002
          %v1777 = vmul.f32 %v1769, 0.002
          %v1778 = vld [vmem:[%s6] sm:$0x3]
          %v1780 = vlaneseq
          %v1781 = vshrl.u32 %v1780, 7
          %v1782 = vsub.s32 0, %v1781
          %v1783 = vrot.slane %v1778, %v1782
          %v1784 = vlaneseq
          %v1785 = vshrl.u32 %v1784, 7
          %v1786 = vsub.s32 1, %v1785
          %v1787 = vrot.slane %v1778, %v1786
          %v1790 = vadd.f32 %v1770, %v1783
          %v1791 = vadd.f32 %v1771, %v1787
          %v1792 = vadd.f32 %v1772, %v1783
          %v1793 = vadd.f32 %v1773, %v1787
          %v1794 = vadd.f32 %v1774, %v1783
          %v1795 = vadd.f32 %v1775, %v1787
          %v1796 = vadd.f32 %v1776, %v1783
          %v1797 = vadd.f32 %v1777, %v1787
          %1798 = vst [vmem:[#allocation11] sm:$0xff] %v1790
          %1799 = vst [vmem:[#allocation11 + $0x8] sm:$0xff] %v1791
          %1800 = vst [vmem:[#allocation11 + $0x10] sm:$0xff] %v1792
          %1801 = vst [vmem:[#allocation11 + $0x18] sm:$0xff] %v1793
          %1802 = vst [vmem:[#allocation11 + $0x20] sm:$0xff] %v1794
          %1803 = vst [vmem:[#allocation11 + $0x28] sm:$0xff] %v1795
          %1804 = vst [vmem:[#allocation11 + $0x30] sm:$0xff] %v1796
          %1805 = vst [vmem:[#allocation11 + $0x38] sm:$0xff] %v1797
        $region80: #{tpu_custom_call.1} parent=47 // pred_fallthru
          _
        // Predicated region
        $region81: #{tpu_custom_call.1} parent=47 // pred_check
          %p1806 = pneg %p233
        $region82: #{tpu_custom_call.1} parent=47 // pred_check_branch
          %1808 = sbr.rel (%p1806) target = $region84
        $region83: #{tpu_custom_call.1} parent=47 // pred_region
          %s1809 = smul.u32 4, %s30
          %s1811 = ssub.s32 1024, 1024
          %1812 = vsyncadd [#allocation5], %s1811
          %s1813 = smul.addr %s1809, 2
          %s1814 = smul.addr %s1813, 128
          %s1815 = scalar_lea.hbm %s7, %s1814
          %s1816 = sshll.u32 [#allocation11], 4
          %s1817 = int_to_ptr.vmem [resolvable:$true] %s1816
          %1822 = dma.vmem_to_hbm [thread:$0]  %s1817, 1024, %s1815, [#allocation5], 256, 256, 16
        $region84: #{tpu_custom_call.1} parent=47 // pred_fallthru
          _
        // Predicated region
        $region85: #{tpu_custom_call.1} parent=47 // pred_check
          %p1823 = pneg %p233
        $region86: #{tpu_custom_call.1} parent=47 // pred_check_branch
          %1825 = sbr.rel (%p1823) target = $region88
        $region87: #{tpu_custom_call.1} parent=47 // pred_region
          %1826 = dma.done [#allocation5], 1024
        $region88: #{tpu_custom_call.1} parent=47 // pred_fallthru
          _
      $region48: #{tpu_custom_call.1} parent=5 // pred_fallthru
        _
      %p1827 = scmp.le.s32.totalorder 2, %s21
      // Predicated region
      $region89: #{tpu_custom_call.1} parent=5 // pred_check
        %p1828 = pneg %p1827
      $region90: #{tpu_custom_call.1} parent=5 // pred_check_branch
        %1830 = sbr.rel (%p1828) target = $region92
      $region91: #{tpu_custom_call.1} parent=5 // pred_region
        %s1831 = ssub.s32 %s21, 2
      $region92: #{tpu_custom_call.1} parent=5 // pred_fallthru
        _
    $region6: #{tpu_custom_call.1} parent=1 // loop_footer
      %s25 = sadd.s32 1, %s21
    $region7: #{tpu_custom_call.1} parent=1 // loop_footer_branch
      %20 = sbr.rel target = $region3
    $region8: #{tpu_custom_call.1} parent=1 // loop_exit
      _
    %1832 = vsyncpa [#allocation4], 1
    %s1833 = scalar_lea.sflag [#allocation4], 1
    %1834 = vsyncpa %s1833, 1
    %1835 = vsyncpa [#allocation7], 1
    %s1836 = scalar_lea.sflag [#allocation7], 1
    %1837 = vsyncpa %s1836, 1
    %1838 = vsyncpa [#allocation10], 1
    %s1839 = scalar_lea.sflag [#allocation10], 1
    %1840 = vsyncpa %s1839, 1
    %1841 = vsyncpa [#allocation5], 1
    %s1842 = scalar_lea.sflag [#allocation5], 1
    %1843 = vsyncpa %s1842, 1

</llo_original>
